<compile_context>
chip_gen: v7x
topology: tpu7x:2x2x1
jax: 0.10.0
libtpu: 0.0.40
codegen_flags: <defaults>
</compile_context>

<pallas_src>
import jax
import jax.numpy as jnp
from jax.experimental import pallas as pl
from jax.experimental.pallas import tpu as pltpu

H = W = L = 8                  # fixed by the py-pde CartesianGrid in the module
GRID_PTS = H * W * L           # 512
WL = W * L                     # 64 lanes of the (8, 64) per-field view
GRAD_DX = 8.0                  # parent-default dx used to build self._grad (see NOTE)
HIDDEN = [16, 64, 64, 16]

DIMS1 = [3] + HIDDEN + [3]     # net1 layer widths (hoisted to the wrapper)
DIMS2 = [6] + HIDDEN + [1]     # net2 layer widths (run inside the kernel)


# ----------------------------------------------------------------------------
# Static packed-weight layout for the in-kernel (net2) layers: one (W_ROWS,128)
# buffer.  Each layer stores W^T (out, in) in cols [0:fin] and its bias in
# column `fin`.  Layer 1 stores only the u-columns of its weight (the coords
# part + bias are folded into the precomputed a0 constant).  Row blocks are
# padded to multiples of 8 so every slice start is tile-aligned.
# ----------------------------------------------------------------------------
_PACK_DIMS = [(3, 16), (16, 64), (64, 64), (64, 16), (16, 1)]


def _build_layout():
    layout, r = [], 0
    for fin, fout in _PACK_DIMS:
        layout.append((r, fin, fout))
        r += max(8, ((fout + 7) // 8) * 8)
    return tuple(layout), r


LAYOUT, W_ROWS = _build_layout()   # offsets 0,16,80,144,160 -> W_ROWS = 168
W_COLS = 128


def pack_params(p2):
    wp = jnp.zeros((W_ROWS, W_COLS), jnp.float32)
    # Layer 1: only the u-columns (input features 3:6); bias folded into a0.
    r, fin, fout = LAYOUT[0]
    w1 = jnp.asarray(p2[0][0], jnp.float32)               # (6, 16)
    wp = wp.at[r:r + fout, 0:fin].set(w1[3:6, :].T)
    # Layers 2..5: full weight + bias.
    for (r, fin, fout), (w, b) in zip(LAYOUT[1:], p2[1:]):
        wp = wp.at[r:r + fout, 0:fin].set(jnp.asarray(w, jnp.float32).T)
        wp = wp.at[r:r + fout, fin].set(jnp.asarray(b, jnp.float32).reshape(-1))
    return wp


# ----------------------------------------------------------------------------
# Constants: cell-center coordinates, small FD operators, hoisted MLP pieces.
# ----------------------------------------------------------------------------
def grid_coords():
    """(512, 3) cell-center coordinates, point index p = h*64 + w*8 + l."""
    centers = -1.0 + (jnp.arange(8, dtype=jnp.float32) + 0.5) * (2.0 / 8.0)
    xc, yc, zc = jnp.meshgrid(centers, centers, centers, indexing="ij")
    return jnp.stack([xc, yc, zc], axis=-1).reshape(GRID_PTS, 3)


def build_fd_operators(dx=GRAD_DX):
    """Exact periodic central-difference operators for the (8, 64) view
    F[h, w*8+l] of a flat field f[p], p = h*64 + w*8 + l:
        d/dh f = dh_l @ F ;  d/dw f = F @ dw_r ;  d/dl f = F @ dl_r."""
    eye8 = jnp.eye(8, dtype=jnp.float32)
    d8 = (jnp.roll(eye8, 1, axis=0) - jnp.roll(eye8, -1, axis=0)) / (2.0 * dx)
    dh_l = d8.T                        # (8, 8)
    dw_r = jnp.kron(d8, eye8)          # (64, 64)
    dl_r = jnp.kron(eye8, d8)          # (64, 64)
    return dh_l, dw_r, dl_r


def precompute_constants(p1, p2):
    """Batch-invariant work hoisted out of the kernel:
       z1 = net1(coords) as a (3,8,64) constant, and a0 = coords-part + bias of
       net2's first layer as a (16,512) constant (features-first layout)."""
    hi = jax.lax.Precision.HIGHEST
    coords = grid_coords()                                   # (512, 3)
    h = coords
    for i, (w, b) in enumerate(p1):
        h = jnp.dot(h, w, precision=hi) + b
        if i < len(p1) - 1:
            h = jnp.maximum(h, 0.0)
    z1c = h.T.reshape(3, H, WL)                              # (3, 8, 64)
    w1, b1 = p2[0]
    a0 = (jnp.dot(coords, w1[0:3, :], precision=hi) + b1).T  # (16, 512)
    return z1c, a0


# ----------------------------------------------------------------------------
# Fused Pallas kernel: one grid step = one batch element.  MLP activations are
# (features, 512) (grid points lane-dense); FD runs on the (8, 64) view.
# ----------------------------------------------------------------------------
def fused_kernel(xf_ref, x2_ref, a0_ref, w_ref, z1_ref, dh_ref, dw_ref, dl_ref,
                 o_ref, s2d_ref):
    f32 = jnp.float32
    u = xf_ref[...]                    # (3, 512)  velocity, points on lanes
    dh_l = dh_ref[...]                 # (8, 8)
    dw_r = dw_ref[...]                 # (64, 64)
    dl_r = dl_ref[...]                 # (64, 64)

    def dense(h, lay, relu=True):
        r, fin, fout = lay
        y = (jnp.dot(w_ref[r:r + fout, 0:fin], h, preferred_element_type=f32)
             + w_ref[r:r + fout, fin:fin + 1])
        return jnp.maximum(y, 0.0) if relu else y

    l1, l2, l3, l4, l5 = LAYOUT

    # ---- div(u) on the (8, 64) view: three tiny exact FD matmuls --------------
    div2d = (jnp.dot(dh_l, x2_ref[0], preferred_element_type=f32)
             + jnp.dot(x2_ref[1], dw_r, preferred_element_type=f32)
             + jnp.dot(x2_ref[2], dl_r, preferred_element_type=f32))   # (8, 64)

    # ---- net2([coords, u]): layer 1 = precomputed coords part + K=3 u matmul --
    r1, fin1, fout1 = l1
    g = jnp.maximum(
        a0_ref[...] + jnp.dot(w_ref[r1:r1 + fout1, 0:fin1], u,
                              preferred_element_type=f32), 0.0)         # (16, 512)
    g = dense(g, l2)
    g = dense(g, l3)
    g = dense(g, l4)
    s_flat = dense(g, l5, relu=False)                                    # (1, 512)

    # ---- relayout (1, 512) -> (8, 64) via a tiny VMEM scratch ------------------
    # (plain static slices + stores; avoids relying on in-kernel reshape support)
    for hh in range(8):
        s2d_ref[hh:hh + 1, :] = s_flat[:, WL * hh:WL * (hh + 1)]
    s2d = s2d_ref[...] * div2d                                           # (8, 64)

    # ---- z2 = grad(s); out = z1 + z2, single store -----------------------------
    gh = jnp.dot(dh_l, s2d, preferred_element_type=f32)
    gw = jnp.dot(s2d, dw_r, preferred_element_type=f32)
    gl = jnp.dot(s2d, dl_r, preferred_element_type=f32)
    z2 = jnp.concatenate([gh[None, :, :], gw[None, :, :], gl[None, :, :]], axis=0)
    o_ref[...] = z1_ref[...] + z2                                        # (3, 8, 64)


# ----------------------------------------------------------------------------
# Wrapper: one pallas_call for the whole forward (plus free reshapes).
# ----------------------------------------------------------------------------
@jax.jit
def nonparametric_forward(x, w_pack, a0, z1c, dh_l, dw_r, dl_r):
    """x: (B, 3, 8, 8, 8) float32  ->  (B, 3, 8, 8, 8) float32."""
    b = x.shape[0]
    assert x.shape[1:] == (3, H, W, L)
    xf = x.astype(jnp.float32).reshape(b, 3, GRID_PTS)   # MLP layout (512 lanes)
    x2 = x.astype(jnp.float32).reshape(b, 3, H, WL)      # FD layout (8 x 64)

    out = pl.pallas_call(
        fused_kernel,
        out_shape=jax.ShapeDtypeStruct((b, 3, H, WL), jnp.float32),
        grid=(b,),
        in_specs=[
            pl.BlockSpec((None, 3, GRID_PTS), lambda i: (i, 0, 0)),    # x, flat
            pl.BlockSpec((None, 3, H, WL), lambda i: (i, 0, 0, 0)),    # x, (8,64)
            pl.BlockSpec((16, GRID_PTS), lambda i: (0, 0)),            # a0 (const)
            pl.BlockSpec((W_ROWS, W_COLS), lambda i: (0, 0)),          # weights
            pl.BlockSpec((3, H, WL), lambda i: (0, 0, 0)),             # z1 (const)
            pl.BlockSpec((H, H), lambda i: (0, 0)),                    # dh_l (const)
            pl.BlockSpec((WL, WL), lambda i: (0, 0)),                  # dw_r (const)
            pl.BlockSpec((WL, WL), lambda i: (0, 0)),                  # dl_r (const)
        ],
        out_specs=pl.BlockSpec((None, 3, H, WL), lambda i: (i, 0, 0, 0)),
        scratch_shapes=[pltpu.VMEM((H, WL), jnp.float32)],
        compiler_params=pltpu.CompilerParams(
            dimension_semantics=("parallel",)),
    )(xf, x2, a0, w_pack, z1c, dh_l, dw_r, dl_r)

    return out.reshape(b, 3, H, W, L)


def derivation_combine_forward(t, state, w_pack, a0, z1c, dh_l, dw_r, dl_r):
    """DerivationCombineModel.forward(t, state): t is unused by the module."""
    del t
    return nonparametric_forward(state, w_pack, a0, z1c, dh_l, dw_r, dl_r)


# ----------------------------------------------------------------------------
# Deterministic parameter init (PyTorch nn.Linear style: U(-1/sqrt(fan_in), ..))
# ----------------------------------------------------------------------------
def init_linear(key, fan_in, fan_out):
    kw, kb = jax.random.split(key)
    bound = 1.0 / float(fan_in) ** 0.5
    w = jax.random.uniform(kw, (fan_in, fan_out), jnp.float32, -bound, bound)
    b = jax.random.uniform(kb, (1, fan_out), jnp.float32, -bound, bound)
    return w, b


def init_params(key):
    keys = jax.random.split(key, 10)
    p1 = [init_linear(keys[i], DIMS1[i], DIMS1[i + 1]) for i in range(5)]
    p2 = [init_linear(keys[5 + i], DIMS2[i], DIMS2[i + 1]) for i in range(5)]
    return p1, p2


# ----------------------------------------------------------------------------
# Pure-JAX reference (correctness check)
# ----------------------------------------------------------------------------
def forward_reference(x, p1, p2):
    b = x.shape[0]
    hi = jax.lax.Precision.HIGHEST

    def ddx(f, axis):
        return (jnp.roll(f, -1, axis=axis) - jnp.roll(f, 1, axis=axis)) / (2.0 * GRAD_DX)

    def mlp(h, params):
        for i, (w, bias) in enumerate(params):
            h = jnp.dot(h, w, precision=hi) + bias
            if i < len(params) - 1:
                h = jnp.maximum(h, 0.0)
        return h

    div_u = ddx(x[:, 0], 1) + ddx(x[:, 1], 2) + ddx(x[:, 2], 3)
    coords_pts = jnp.tile(grid_coords(), (b, 1))
    u_pts = jnp.transpose(x, (0, 2, 3, 4, 1)).reshape(-1, 3)
    z1 = mlp(coords_pts, p1).reshape(b, H, W, L, 3).transpose(0, 4, 1, 2, 3)
    y = jnp.concatenate([coords_pts, u_pts], axis=1)
    s = (mlp(y, p2) * div_u.reshape(-1, 1)).reshape(b, H, W, L)
    z2 = jnp.stack([ddx(s, 1), ddx(s, 2), ddx(s, 3)], axis=1)
    return z1 + z2


# ----------------------------------------------------------------------------
if __name__ == "__main__":
    key = jax.random.PRNGKey(0)
    key_x, key_p = jax.random.split(key)

    batch = 2
    x = jax.random.normal(key_x, (batch, 3, H, W, L), jnp.float32)
    p1, p2 = init_params(key_p)

    # Batch-invariant precompute (hoisted out of the kernel, done once).
    w_pack = pack_params(p2)
    z1c, a0 = precompute_constants(p1, p2)
    dh_l, dw_r, dl_r = build_fd_operators()

    out = nonparametric_forward(x, w_pack, a0, z1c, dh_l, dw_r, dl_r)
    out = jax.block_until_ready(out)
    assert out.shape == (batch, 3, H, W, L)

    ref = jax.block_until_ready(forward_reference(x, p1, p2))
    max_err = float(jnp.max(jnp.abs(out - ref)))
    assert bool(jnp.allclose(out, ref, rtol=5e-3, atol=2e-4)), (
        "max abs err = %e" % max_err)

    print("KERNEL_OK")
</pallas_src>

<mosaic_0001>
module attributes {stable_mosaic.version = 11 : i64} {
  func.func @fused_kernel(%arg0: i32, %arg1: memref<1x3x512xf32, #tpu.memory_space<vmem>>, %arg2: memref<1x3x8x64xf32, #tpu.memory_space<vmem>>, %arg3: memref<16x512xf32, #tpu.memory_space<vmem>>, %arg4: memref<168x128xf32, #tpu.memory_space<vmem>>, %arg5: memref<3x8x64xf32, #tpu.memory_space<vmem>>, %arg6: memref<8x8xf32, #tpu.memory_space<vmem>>, %arg7: memref<64x64xf32, #tpu.memory_space<vmem>>, %arg8: memref<64x64xf32, #tpu.memory_space<vmem>>, %arg9: memref<1x3x8x64xf32, #tpu.memory_space<vmem>>, %arg10: memref<8x64xf32, #tpu.memory_space<vmem>>) attributes {dimension_semantics = [#tpu.dimension_semantics<parallel>], iteration_bounds = array<i64: 2>, scalar_prefetch = 0 : i64, scratch_operands = 1 : i64, tpu.core_type = #tpu.core_type<tc>, window_params = [{transform_indices = @transform_0, window_bounds = array<i64: 1, 3, 512>}, {transform_indices = @transform_1, window_bounds = array<i64: 1, 3, 8, 64>}, {pipeline_mode = #tpu.pipeline_mode<synchronous>, transform_indices = @transform_2, window_bounds = array<i64: 16, 512>}, {pipeline_mode = #tpu.pipeline_mode<synchronous>, transform_indices = @transform_3, window_bounds = array<i64: 168, 128>}, {pipeline_mode = #tpu.pipeline_mode<synchronous>, transform_indices = @transform_4, window_bounds = array<i64: 3, 8, 64>}, {pipeline_mode = #tpu.pipeline_mode<synchronous>, transform_indices = @transform_5, window_bounds = array<i64: 8, 8>}, {pipeline_mode = #tpu.pipeline_mode<synchronous>, transform_indices = @transform_6, window_bounds = array<i64: 64, 64>}, {pipeline_mode = #tpu.pipeline_mode<synchronous>, transform_indices = @transform_7, window_bounds = array<i64: 64, 64>}, {transform_indices = @transform_8, window_bounds = array<i64: 1, 3, 8, 64>}]} {
    %c0 = arith.constant 0 : index
    %c0_0 = arith.constant 0 : index
    %c0_1 = arith.constant 0 : index
    %0 = vector.load %arg1[%c0, %c0_0, %c0_1] : memref<1x3x512xf32, #tpu.memory_space<vmem>>, vector<1x3x512xf32>
    %1 = vector.shape_cast %0 : vector<1x3x512xf32> to vector<3x512xf32>
    %c0_2 = arith.constant 0 : index
    %c0_3 = arith.constant 0 : index
    %2 = vector.load %arg6[%c0_2, %c0_3] : memref<8x8xf32, #tpu.memory_space<vmem>>, vector<8x8xf32>
    %c0_4 = arith.constant 0 : index
    %c0_5 = arith.constant 0 : index
    %3 = vector.load %arg7[%c0_4, %c0_5] : memref<64x64xf32, #tpu.memory_space<vmem>>, vector<64x64xf32>
    %c0_6 = arith.constant 0 : index
    %c0_7 = arith.constant 0 : index
    %4 = vector.load %arg8[%c0_6, %c0_7] : memref<64x64xf32, #tpu.memory_space<vmem>>, vector<64x64xf32>
    %c0_8 = arith.constant 0 : index
    %c0_9 = arith.constant 0 : index
    %c0_10 = arith.constant 0 : index
    %c0_11 = arith.constant 0 : index
    %5 = vector.load %arg2[%c0_8, %c0_9, %c0_10, %c0_11] : memref<1x3x8x64xf32, #tpu.memory_space<vmem>>, vector<1x1x8x64xf32>
    %6 = vector.shape_cast %5 : vector<1x1x8x64xf32> to vector<8x64xf32>
    %cst = arith.constant dense<0.000000e+00> : vector<8x64xf32>
    %7 = tpu.matmul %2, %6, %cst {dimension_numbers = #tpu.dot_dimension_numbers<[1], [0], [0], [1], [0, 0, 1, 1], [], []>} : vector<8x8xf32>, vector<8x64xf32>, vector<8x64xf32> -> vector<8x64xf32>
    %c0_12 = arith.constant 0 : index
    %c1 = arith.constant 1 : index
    %c0_13 = arith.constant 0 : index
    %c0_14 = arith.constant 0 : index
    %8 = vector.load %arg2[%c0_12, %c1, %c0_13, %c0_14] : memref<1x3x8x64xf32, #tpu.memory_space<vmem>>, vector<1x1x8x64xf32>
    %9 = vector.shape_cast %8 : vector<1x1x8x64xf32> to vector<8x64xf32>
    %cst_15 = arith.constant dense<0.000000e+00> : vector<8x64xf32>
    %10 = tpu.matmul %9, %3, %cst_15 {dimension_numbers = #tpu.dot_dimension_numbers<[1], [0], [0], [1], [0, 0, 1, 1], [], []>} : vector<8x64xf32>, vector<64x64xf32>, vector<8x64xf32> -> vector<8x64xf32>
    %11 = arith.addf %7, %10 : vector<8x64xf32>
    %c0_16 = arith.constant 0 : index
    %c2 = arith.constant 2 : index
    %c0_17 = arith.constant 0 : index
    %c0_18 = arith.constant 0 : index
    %12 = vector.load %arg2[%c0_16, %c2, %c0_17, %c0_18] : memref<1x3x8x64xf32, #tpu.memory_space<vmem>>, vector<1x1x8x64xf32>
    %13 = vector.shape_cast %12 : vector<1x1x8x64xf32> to vector<8x64xf32>
    %cst_19 = arith.constant dense<0.000000e+00> : vector<8x64xf32>
    %14 = tpu.matmul %13, %4, %cst_19 {dimension_numbers = #tpu.dot_dimension_numbers<[1], [0], [0], [1], [0, 0, 1, 1], [], []>} : vector<8x64xf32>, vector<64x64xf32>, vector<8x64xf32> -> vector<8x64xf32>
    %15 = arith.addf %11, %14 : vector<8x64xf32>
    %c0_20 = arith.constant 0 : index
    %c0_21 = arith.constant 0 : index
    %16 = vector.load %arg3[%c0_20, %c0_21] : memref<16x512xf32, #tpu.memory_space<vmem>>, vector<16x512xf32>
    %c0_22 = arith.constant 0 : index
    %c0_23 = arith.constant 0 : index
    %17 = vector.load %arg4[%c0_22, %c0_23] : memref<168x128xf32, #tpu.memory_space<vmem>>, vector<16x3xf32>
    %cst_24 = arith.constant dense<0.000000e+00> : vector<16x512xf32>
    %18 = tpu.matmul %17, %1, %cst_24 {dimension_numbers = #tpu.dot_dimension_numbers<[1], [0], [0], [1], [0, 0, 1, 1], [], []>} : vector<16x3xf32>, vector<3x512xf32>, vector<16x512xf32> -> vector<16x512xf32>
    %19 = arith.addf %16, %18 : vector<16x512xf32>
    %cst_25 = arith.constant 0.000000e+00 : f32
    %20 = vector.broadcast %cst_25 : f32 to vector<16x512xf32>
    %21 = arith.maximumf %19, %20 : vector<16x512xf32>
    %c16 = arith.constant 16 : index
    %c0_26 = arith.constant 0 : index
    %22 = vector.load %arg4[%c16, %c0_26] : memref<168x128xf32, #tpu.memory_space<vmem>>, vector<64x16xf32>
    %cst_27 = arith.constant dense<0.000000e+00> : vector<64x512xf32>
    %23 = tpu.matmul %22, %21, %cst_27 {dimension_numbers = #tpu.dot_dimension_numbers<[1], [0], [0], [1], [0, 0, 1, 1], [], []>} : vector<64x16xf32>, vector<16x512xf32>, vector<64x512xf32> -> vector<64x512xf32>
    %c16_28 = arith.constant 16 : index
    %c16_29 = arith.constant 16 : index
    %24 = vector.load %arg4[%c16_28, %c16_29] : memref<168x128xf32, #tpu.memory_space<vmem>>, vector<64x1xf32>
    %25 = vector.broadcast %24 : vector<64x1xf32> to vector<64x512xf32>
    %26 = arith.addf %23, %25 : vector<64x512xf32>
    %cst_30 = arith.constant 0.000000e+00 : f32
    %27 = vector.broadcast %cst_30 : f32 to vector<64x512xf32>
    %28 = arith.maximumf %26, %27 : vector<64x512xf32>
    %c80 = arith.constant 80 : index
    %c0_31 = arith.constant 0 : index
    %29 = vector.load %arg4[%c80, %c0_31] : memref<168x128xf32, #tpu.memory_space<vmem>>, vector<64x64xf32>
    %cst_32 = arith.constant dense<0.000000e+00> : vector<64x512xf32>
    %30 = tpu.matmul %29, %28, %cst_32 {dimension_numbers = #tpu.dot_dimension_numbers<[1], [0], [0], [1], [0, 0, 1, 1], [], []>} : vector<64x64xf32>, vector<64x512xf32>, vector<64x512xf32> -> vector<64x512xf32>
    %c80_33 = arith.constant 80 : index
    %c64 = arith.constant 64 : index
    %31 = vector.load %arg4[%c80_33, %c64] : memref<168x128xf32, #tpu.memory_space<vmem>>, vector<64x1xf32>
    %32 = vector.broadcast %31 : vector<64x1xf32> to vector<64x512xf32>
    %33 = arith.addf %30, %32 : vector<64x512xf32>
    %cst_34 = arith.constant 0.000000e+00 : f32
    %34 = vector.broadcast %cst_34 : f32 to vector<64x512xf32>
    %35 = arith.maximumf %33, %34 : vector<64x512xf32>
    %c144 = arith.constant 144 : index
    %c0_35 = arith.constant 0 : index
    %36 = vector.load %arg4[%c144, %c0_35] : memref<168x128xf32, #tpu.memory_space<vmem>>, vector<16x64xf32>
    %cst_36 = arith.constant dense<0.000000e+00> : vector<16x512xf32>
    %37 = tpu.matmul %36, %35, %cst_36 {dimension_numbers = #tpu.dot_dimension_numbers<[1], [0], [0], [1], [0, 0, 1, 1], [], []>} : vector<16x64xf32>, vector<64x512xf32>, vector<16x512xf32> -> vector<16x512xf32>
    %c144_37 = arith.constant 144 : index
    %c64_38 = arith.constant 64 : index
    %38 = vector.load %arg4[%c144_37, %c64_38] : memref<168x128xf32, #tpu.memory_space<vmem>>, vector<16x1xf32>
    %39 = vector.broadcast %38 : vector<16x1xf32> to vector<16x512xf32>
    %40 = arith.addf %37, %39 : vector<16x512xf32>
    %cst_39 = arith.constant 0.000000e+00 : f32
    %41 = vector.broadcast %cst_39 : f32 to vector<16x512xf32>
    %42 = arith.maximumf %40, %41 : vector<16x512xf32>
    %c160 = arith.constant 160 : index
    %c0_40 = arith.constant 0 : index
    %43 = vector.load %arg4[%c160, %c0_40] : memref<168x128xf32, #tpu.memory_space<vmem>>, vector<1x16xf32>
    %cst_41 = arith.constant dense<0.000000e+00> : vector<1x512xf32>
    %44 = tpu.matmul %43, %42, %cst_41 {dimension_numbers = #tpu.dot_dimension_numbers<[1], [0], [0], [1], [0, 0, 1, 1], [], []>} : vector<1x16xf32>, vector<16x512xf32>, vector<1x512xf32> -> vector<1x512xf32>
    %c160_42 = arith.constant 160 : index
    %c16_43 = arith.constant 16 : index
    %45 = vector.load %arg4[%c160_42, %c16_43] : memref<168x128xf32, #tpu.memory_space<vmem>>, vector<1x1xf32>
    %46 = vector.broadcast %45 : vector<1x1xf32> to vector<1x512xf32>
    %47 = arith.addf %44, %46 : vector<1x512xf32>
    %48 = vector.extract_strided_slice %47 {offsets = [0, 0], sizes = [1, 64], strides = [1, 1]} : vector<1x512xf32> to vector<1x64xf32>
    %c0_44 = arith.constant 0 : index
    %c0_45 = arith.constant 0 : index
    %49 = vector.load %arg10[%c0_44, %c0_45] : memref<8x64xf32, #tpu.memory_space<vmem>>, vector<1x64xf32>
    tpu.vector_store %arg10[%c0_44, %c0_45], %48 {strides = array<i32>} : memref<8x64xf32, #tpu.memory_space<vmem>>, vector<1x64xf32>,
    %50 = vector.extract_strided_slice %47 {offsets = [0, 64], sizes = [1, 64], strides = [1, 1]} : vector<1x512xf32> to vector<1x64xf32>
    %c1_46 = arith.constant 1 : index
    %c0_47 = arith.constant 0 : index
    %51 = vector.load %arg10[%c1_46, %c0_47] : memref<8x64xf32, #tpu.memory_space<vmem>>, vector<1x64xf32>
    tpu.vector_store %arg10[%c1_46, %c0_47], %50 {strides = array<i32>} : memref<8x64xf32, #tpu.memory_space<vmem>>, vector<1x64xf32>,
    %52 = vector.extract_strided_slice %47 {offsets = [0, 128], sizes = [1, 64], strides = [1, 1]} : vector<1x512xf32> to vector<1x64xf32>
    %c2_48 = arith.constant 2 : index
    %c0_49 = arith.constant 0 : index
    %53 = vector.load %arg10[%c2_48, %c0_49] : memref<8x64xf32, #tpu.memory_space<vmem>>, vector<1x64xf32>
    tpu.vector_store %arg10[%c2_48, %c0_49], %52 {strides = array<i32>} : memref<8x64xf32, #tpu.memory_space<vmem>>, vector<1x64xf32>,
    %54 = vector.extract_strided_slice %47 {offsets = [0, 192], sizes = [1, 64], strides = [1, 1]} : vector<1x512xf32> to vector<1x64xf32>
    %c3 = arith.constant 3 : index
    %c0_50 = arith.constant 0 : index
    %55 = vector.load %arg10[%c3, %c0_50] : memref<8x64xf32, #tpu.memory_space<vmem>>, vector<1x64xf32>
    tpu.vector_store %arg10[%c3, %c0_50], %54 {strides = array<i32>} : memref<8x64xf32, #tpu.memory_space<vmem>>, vector<1x64xf32>,
    %56 = vector.extract_strided_slice %47 {offsets = [0, 256], sizes = [1, 64], strides = [1, 1]} : vector<1x512xf32> to vector<1x64xf32>
    %c4 = arith.constant 4 : index
    %c0_51 = arith.constant 0 : index
    %57 = vector.load %arg10[%c4, %c0_51] : memref<8x64xf32, #tpu.memory_space<vmem>>, vector<1x64xf32>
    tpu.vector_store %arg10[%c4, %c0_51], %56 {strides = array<i32>} : memref<8x64xf32, #tpu.memory_space<vmem>>, vector<1x64xf32>,
    %58 = vector.extract_strided_slice %47 {offsets = [0, 320], sizes = [1, 64], strides = [1, 1]} : vector<1x512xf32> to vector<1x64xf32>
    %c5 = arith.constant 5 : index
    %c0_52 = arith.constant 0 : index
    %59 = vector.load %arg10[%c5, %c0_52] : memref<8x64xf32, #tpu.memory_space<vmem>>, vector<1x64xf32>
    tpu.vector_store %arg10[%c5, %c0_52], %58 {strides = array<i32>} : memref<8x64xf32, #tpu.memory_space<vmem>>, vector<1x64xf32>,
    %60 = vector.extract_strided_slice %47 {offsets = [0, 384], sizes = [1, 64], strides = [1, 1]} : vector<1x512xf32> to vector<1x64xf32>
    %c6 = arith.constant 6 : index
    %c0_53 = arith.constant 0 : index
    %61 = vector.load %arg10[%c6, %c0_53] : memref<8x64xf32, #tpu.memory_space<vmem>>, vector<1x64xf32>
    tpu.vector_store %arg10[%c6, %c0_53], %60 {strides = array<i32>} : memref<8x64xf32, #tpu.memory_space<vmem>>, vector<1x64xf32>,
    %62 = vector.extract_strided_slice %47 {offsets = [0, 448], sizes = [1, 64], strides = [1, 1]} : vector<1x512xf32> to vector<1x64xf32>
    %c7 = arith.constant 7 : index
    %c0_54 = arith.constant 0 : index
    %63 = vector.load %arg10[%c7, %c0_54] : memref<8x64xf32, #tpu.memory_space<vmem>>, vector<1x64xf32>
    tpu.vector_store %arg10[%c7, %c0_54], %62 {strides = array<i32>} : memref<8x64xf32, #tpu.memory_space<vmem>>, vector<1x64xf32>,
    %c0_55 = arith.constant 0 : index
    %c0_56 = arith.constant 0 : index
    %64 = vector.load %arg10[%c0_55, %c0_56] : memref<8x64xf32, #tpu.memory_space<vmem>>, vector<8x64xf32>
    %65 = arith.mulf %64, %15 : vector<8x64xf32>
    %cst_57 = arith.constant dense<0.000000e+00> : vector<8x64xf32>
    %66 = tpu.matmul %2, %65, %cst_57 {dimension_numbers = #tpu.dot_dimension_numbers<[1], [0], [0], [1], [0, 0, 1, 1], [], []>} : vector<8x8xf32>, vector<8x64xf32>, vector<8x64xf32> -> vector<8x64xf32>
    %cst_58 = arith.constant dense<0.000000e+00> : vector<8x64xf32>
    %67 = tpu.matmul %65, %3, %cst_58 {dimension_numbers = #tpu.dot_dimension_numbers<[1], [0], [0], [1], [0, 0, 1, 1], [], []>} : vector<8x64xf32>, vector<64x64xf32>, vector<8x64xf32> -> vector<8x64xf32>
    %cst_59 = arith.constant dense<0.000000e+00> : vector<8x64xf32>
    %68 = tpu.matmul %65, %4, %cst_59 {dimension_numbers = #tpu.dot_dimension_numbers<[1], [0], [0], [1], [0, 0, 1, 1], [], []>} : vector<8x64xf32>, vector<64x64xf32>, vector<8x64xf32> -> vector<8x64xf32>
    %69 = vector.shape_cast %66 : vector<8x64xf32> to vector<1x8x64xf32>
    %70 = vector.shape_cast %67 : vector<8x64xf32> to vector<1x8x64xf32>
    %71 = vector.shape_cast %68 : vector<8x64xf32> to vector<1x8x64xf32>
    %72 = tpu.concatenate %69, %70, %71 in 0 : vector<1x8x64xf32>, vector<1x8x64xf32>, vector<1x8x64xf32> -> vector<3x8x64xf32>
    %c0_60 = arith.constant 0 : index
    %c0_61 = arith.constant 0 : index
    %c0_62 = arith.constant 0 : index
    %73 = vector.load %arg5[%c0_60, %c0_61, %c0_62] : memref<3x8x64xf32, #tpu.memory_space<vmem>>, vector<3x8x64xf32>
    %74 = arith.addf %73, %72 : vector<3x8x64xf32>
    %c0_63 = arith.constant 0 : index
    %c0_64 = arith.constant 0 : index
    %c0_65 = arith.constant 0 : index
    %c0_66 = arith.constant 0 : index
    %75 = vector.load %arg9[%c0_63, %c0_64, %c0_65, %c0_66] : memref<1x3x8x64xf32, #tpu.memory_space<vmem>>, vector<1x3x8x64xf32>
    %76 = vector.shape_cast %75 : vector<1x3x8x64xf32> to vector<3x8x64xf32>
    %77 = vector.shape_cast %74 : vector<3x8x64xf32> to vector<1x3x8x64xf32>
    tpu.vector_store %arg9[%c0_63, %c0_64, %c0_65, %c0_66], %77 {strides = array<i32>} : memref<1x3x8x64xf32, #tpu.memory_space<vmem>>, vector<1x3x8x64xf32>,
    return
  }
  func.func @transform_0(%arg0: i32) -> (i32, i32, i32) {
    %c0_i32 = arith.constant 0 : i32
    %c0_i32_0 = arith.constant 0 : i32
    %c0_i32_1 = arith.constant 0 : i32
    return %arg0, %c0_i32, %c0_i32_0 : i32, i32, i32
  }
  func.func @transform_1(%arg0: i32) -> (i32, i32, i32, i32) {
    %c0_i32 = arith.constant 0 : i32
    %c0_i32_0 = arith.constant 0 : i32
    %c0_i32_1 = arith.constant 0 : i32
    %c0_i32_2 = arith.constant 0 : i32
    return %arg0, %c0_i32, %c0_i32_0, %c0_i32_1 : i32, i32, i32, i32
  }
  func.func @transform_2(%arg0: i32) -> (i32, i32) {
    %c0_i32 = arith.constant 0 : i32
    %c0_i32_0 = arith.constant 0 : i32
    %c0_i32_1 = arith.constant 0 : i32
    return %c0_i32, %c0_i32_0 : i32, i32
  }
  func.func @transform_3(%arg0: i32) -> (i32, i32) {
    %c0_i32 = arith.constant 0 : i32
    %c0_i32_0 = arith.constant 0 : i32
    %c0_i32_1 = arith.constant 0 : i32
    return %c0_i32, %c0_i32_0 : i32, i32
  }
  func.func @transform_4(%arg0: i32) -> (i32, i32, i32) {
    %c0_i32 = arith.constant 0 : i32
    %c0_i32_0 = arith.constant 0 : i32
    %c0_i32_1 = arith.constant 0 : i32
    %c0_i32_2 = arith.constant 0 : i32
    return %c0_i32, %c0_i32_0, %c0_i32_1 : i32, i32, i32
  }
  func.func @transform_5(%arg0: i32) -> (i32, i32) {
    %c0_i32 = arith.constant 0 : i32
    %c0_i32_0 = arith.constant 0 : i32
    %c0_i32_1 = arith.constant 0 : i32
    return %c0_i32, %c0_i32_0 : i32, i32
  }
  func.func @transform_6(%arg0: i32) -> (i32, i32) {
    %c0_i32 = arith.constant 0 : i32
    %c0_i32_0 = arith.constant 0 : i32
    %c0_i32_1 = arith.constant 0 : i32
    return %c0_i32, %c0_i32_0 : i32, i32
  }
  func.func @transform_7(%arg0: i32) -> (i32, i32) {
    %c0_i32 = arith.constant 0 : i32
    %c0_i32_0 = arith.constant 0 : i32
    %c0_i32_1 = arith.constant 0 : i32
    return %c0_i32, %c0_i32_0 : i32, i32
  }
  func.func @transform_8(%arg0: i32) -> (i32, i32, i32, i32) {
    %c0_i32 = arith.constant 0 : i32
    %c0_i32_0 = arith.constant 0 : i32
    %c0_i32_1 = arith.constant 0 : i32
    %c0_i32_2 = arith.constant 0 : i32
    return %arg0, %c0_i32, %c0_i32_0, %c0_i32_1 : i32, i32, i32, i32
  }
}

</mosaic_0001>

<llo_original>
// kernel: nonparametric_forward.1
$region0: #{nonparametric_forward.1}
  #allocation0 [shape = 'u32[]', space=smem, size = 0x4, offset = 0x4, fixed_abs, tag = 'smem constant byte address 0x4 - core index']
  #allocation1 [shape = 'u32[144,128]{1,0:T(1,128)}', space=vmem, size = 0x12000, scoped, tag = 'internal scratch']
  #allocation2 [shape = 'f32[8,64]{1,0:T(8,128)}', space=vmem, size = 0x1000, scoped, tag = 'scratch operand']
  %s0 = inlined_call_operand.vmem [shape: f32[2,3,512], index: 0, kind: input, shape index: {}]
  %s1 = inlined_call_operand.vmem [shape: f32[2,3,8,64], index: 1, kind: input, shape index: {}]
  %s2 = inlined_call_operand.vmem [shape: f32[16,512], index: 2, kind: input, shape index: {}]
  %s3 = inlined_call_operand.vmem [shape: f32[168,128], index: 3, kind: input, shape index: {}]
  %s4 = inlined_call_operand.vmem [shape: f32[3,8,64], index: 4, kind: input, shape index: {}]
  %s5 = inlined_call_operand.vmem [shape: f32[8,8], index: 5, kind: input, shape index: {}]
  %s6 = inlined_call_operand.vmem [shape: f32[64,64], index: 6, kind: input, shape index: {}]
  %s7 = inlined_call_operand.vmem [shape: f32[64,64], index: 7, kind: input, shape index: {}]
  %s8 = inlined_call_operand.vmem [shape: f32[2,3,8,64], index: 8, kind: output, shape index: {}]
  %s9 = sld [smem:[#allocation0]]
  $region65: #{nonparametric_forward.1} parent=0
    _
  %s11 = ssub.s32 1, %s9
  %s12 = scalar_select 0, %s11, %s9
  loop: start=0, step=1, limit=4
  $region2: #{nonparametric_forward.1} parent=0 // loop_pre_header
    _
  $region3: #{nonparametric_forward.1} parent=0 // loop_header
    %s14 = sphi 0, %s18
    %p15 = scmp.ge.s32.totalorder %s14, 4
    %s24 = sphi 0, %s26
    %s27 = sphi 0, %s24
    %s28 = sphi 0, %s27
    %s44 = sphi 0, %s28
    %s50 = sphi 0, %s52
    %s53 = sphi 0, %s50
    %s54 = sphi 0, %s53
    %s70 = sphi 0, %s54
    %s74 = sphi 0, %s74
    %s76 = sphi 0, %s74
    %s77 = sphi 0, %s76
    %s91 = sphi 0, %s77
    %s95 = sphi 0, %s95
    %s97 = sphi 0, %s95
    %s98 = sphi 0, %s97
    %s112 = sphi 0, %s98
    %s116 = sphi 0, %s116
    %s118 = sphi 0, %s116
    %s119 = sphi 0, %s118
    %s133 = sphi 0, %s119
    %s137 = sphi 0, %s137
    %s139 = sphi 0, %s137
    %s140 = sphi 0, %s139
    %s154 = sphi 0, %s140
    %s158 = sphi 0, %s158
    %s160 = sphi 0, %s158
    %s161 = sphi 0, %s160
    %s175 = sphi 0, %s161
    %s179 = sphi 0, %s179
    %s181 = sphi 0, %s179
    %s182 = sphi 0, %s181
    %s196 = sphi 0, %s182
    %s202 = sphi 0, %s204
    %s205 = sphi 0, %s202
    %s206 = sphi 0, %s205
    %s222 = sphi 0, %s206
  $region4: #{nonparametric_forward.1} parent=0 // loop_header_branch
    %17 = sbr.rel (%p15) target = $region8
  $region5: #{nonparametric_forward.1} parent=0 // loop_body
    %s19 = ssub.s32 %s14, 1
    %s20 = ssub.s32 %s14, 2
    %s21 = sadd.s32 %s14, 1
    %s22 = ssub.s32 %s14, %s21
    %p23 = scmp.eq.s32.totalorder %s22, 0
    %s25 = sadd.s32 %s24, 1
    %s26 = scalar_select %p23, %s24, %s25
    %p29 = pneg %p23
    %p30 = scmp.eq.s32.totalorder %s14, 1
    %p31 = por %p29, %p30
    %p32 = scmp.ne.s32.totalorder %s24, %s27
    %p33 = scmp.eq.s32.totalorder %s14, 0
    %p34 = por %p32, %p33
    %p35 = scmp.ne.s32.totalorder %s24, %s27
    %p36 = scmp.eq.s32.totalorder %s19, 1
    %p37 = por %p35, %p36
    %p38 = scmp.ne.s32.totalorder %s27, %s28
    %p39 = scmp.eq.s32.totalorder %s19, 0
    %p40 = por %p38, %p39
    %p41 = scmp.ne.s32.totalorder %s27, %s28
    %p42 = scmp.eq.s32.totalorder %s20, 1
    %p43 = por %p41, %p42
    %p45 = scmp.ne.s32.totalorder %s28, %s44
    %p46 = scmp.eq.s32.totalorder %s20, 0
    %p47 = por %p45, %p46
    %s48 = ssub.s32 %s14, %s21
    %p49 = scmp.eq.s32.totalorder %s48, 0
    %s51 = sadd.s32 %s50, 1
    %s52 = scalar_select %p49, %s50, %s51
    %p55 = pneg %p49
    %p56 = scmp.eq.s32.totalorder %s14, 1
    %p57 = por %p55, %p56
    %p58 = scmp.ne.s32.totalorder %s50, %s53
    %p59 = scmp.eq.s32.totalorder %s14, 0
    %p60 = por %p58, %p59
    %p61 = scmp.ne.s32.totalorder %s50, %s53
    %p62 = scmp.eq.s32.totalorder %s19, 1
    %p63 = por %p61, %p62
    %p64 = scmp.ne.s32.totalorder %s53, %s54
    %p65 = scmp.eq.s32.totalorder %s19, 0
    %p66 = por %p64, %p65
    %p67 = scmp.ne.s32.totalorder %s53, %s54
    %p68 = scmp.eq.s32.totalorder %s20, 1
    %p69 = por %p67, %p68
    %p71 = scmp.ne.s32.totalorder %s54, %s70
    %p72 = scmp.eq.s32.totalorder %s20, 0
    %p73 = por %p71, %p72
    %s75 = sadd.s32 %s74, 1
    %p78 = scmp.eq.s32.totalorder %s14, 1
    %p79 = scmp.ne.s32.totalorder %s74, %s76
    %p80 = scmp.eq.s32.totalorder %s14, 0
    %p81 = por %p79, %p80
    %p82 = scmp.ne.s32.totalorder %s74, %s76
    %p83 = scmp.eq.s32.totalorder %s19, 1
    %p84 = por %p82, %p83
    %p85 = scmp.ne.s32.totalorder %s76, %s77
    %p86 = scmp.eq.s32.totalorder %s19, 0
    %p87 = por %p85, %p86
    %p88 = scmp.ne.s32.totalorder %s76, %s77
    %p89 = scmp.eq.s32.totalorder %s20, 1
    %p90 = por %p88, %p89
    %p92 = scmp.ne.s32.totalorder %s77, %s91
    %p93 = scmp.eq.s32.totalorder %s20, 0
    %p94 = por %p92, %p93
    %s96 = sadd.s32 %s95, 1
    %p99 = scmp.eq.s32.totalorder %s14, 1
    %p100 = scmp.ne.s32.totalorder %s95, %s97
    %p101 = scmp.eq.s32.totalorder %s14, 0
    %p102 = por %p100, %p101
    %p103 = scmp.ne.s32.totalorder %s95, %s97
    %p104 = scmp.eq.s32.totalorder %s19, 1
    %p105 = por %p103, %p104
    %p106 = scmp.ne.s32.totalorder %s97, %s98
    %p107 = scmp.eq.s32.totalorder %s19, 0
    %p108 = por %p106, %p107
    %p109 = scmp.ne.s32.totalorder %s97, %s98
    %p110 = scmp.eq.s32.totalorder %s20, 1
    %p111 = por %p109, %p110
    %p113 = scmp.ne.s32.totalorder %s98, %s112
    %p114 = scmp.eq.s32.totalorder %s20, 0
    %p115 = por %p113, %p114
    %s117 = sadd.s32 %s116, 1
    %p120 = scmp.eq.s32.totalorder %s14, 1
    %p121 = scmp.ne.s32.totalorder %s116, %s118
    %p122 = scmp.eq.s32.totalorder %s14, 0
    %p123 = por %p121, %p122
    %p124 = scmp.ne.s32.totalorder %s116, %s118
    %p125 = scmp.eq.s32.totalorder %s19, 1
    %p126 = por %p124, %p125
    %p127 = scmp.ne.s32.totalorder %s118, %s119
    %p128 = scmp.eq.s32.totalorder %s19, 0
    %p129 = por %p127, %p128
    %p130 = scmp.ne.s32.totalorder %s118, %s119
    %p131 = scmp.eq.s32.totalorder %s20, 1
    %p132 = por %p130, %p131
    %p134 = scmp.ne.s32.totalorder %s119, %s133
    %p135 = scmp.eq.s32.totalorder %s20, 0
    %p136 = por %p134, %p135
    %s138 = sadd.s32 %s137, 1
    %p141 = scmp.eq.s32.totalorder %s14, 1
    %p142 = scmp.ne.s32.totalorder %s137, %s139
    %p143 = scmp.eq.s32.totalorder %s14, 0
    %p144 = por %p142, %p143
    %p145 = scmp.ne.s32.totalorder %s137, %s139
    %p146 = scmp.eq.s32.totalorder %s19, 1
    %p147 = por %p145, %p146
    %p148 = scmp.ne.s32.totalorder %s139, %s140
    %p149 = scmp.eq.s32.totalorder %s19, 0
    %p150 = por %p148, %p149
    %p151 = scmp.ne.s32.totalorder %s139, %s140
    %p152 = scmp.eq.s32.totalorder %s20, 1
    %p153 = por %p151, %p152
    %p155 = scmp.ne.s32.totalorder %s140, %s154
    %p156 = scmp.eq.s32.totalorder %s20, 0
    %p157 = por %p155, %p156
    %s159 = sadd.s32 %s158, 1
    %p162 = scmp.eq.s32.totalorder %s14, 1
    %p163 = scmp.ne.s32.totalorder %s158, %s160
    %p164 = scmp.eq.s32.totalorder %s14, 0
    %p165 = por %p163, %p164
    %p166 = scmp.ne.s32.totalorder %s158, %s160
    %p167 = scmp.eq.s32.totalorder %s19, 1
    %p168 = por %p166, %p167
    %p169 = scmp.ne.s32.totalorder %s160, %s161
    %p170 = scmp.eq.s32.totalorder %s19, 0
    %p171 = por %p169, %p170
    %p172 = scmp.ne.s32.totalorder %s160, %s161
    %p173 = scmp.eq.s32.totalorder %s20, 1
    %p174 = por %p172, %p173
    %p176 = scmp.ne.s32.totalorder %s161, %s175
    %p177 = scmp.eq.s32.totalorder %s20, 0
    %p178 = por %p176, %p177
    %s180 = sadd.s32 %s179, 1
    %p183 = scmp.eq.s32.totalorder %s14, 1
    %p184 = scmp.ne.s32.totalorder %s179, %s181
    %p185 = scmp.eq.s32.totalorder %s14, 0
    %p186 = por %p184, %p185
    %p187 = scmp.ne.s32.totalorder %s179, %s181
    %p188 = scmp.eq.s32.totalorder %s19, 1
    %p189 = por %p187, %p188
    %p190 = scmp.ne.s32.totalorder %s181, %s182
    %p191 = scmp.eq.s32.totalorder %s19, 0
    %p192 = por %p190, %p191
    %p193 = scmp.ne.s32.totalorder %s181, %s182
    %p194 = scmp.eq.s32.totalorder %s20, 1
    %p195 = por %p193, %p194
    %p197 = scmp.ne.s32.totalorder %s182, %s196
    %p198 = scmp.eq.s32.totalorder %s20, 0
    %p199 = por %p197, %p198
    %s200 = ssub.s32 %s14, %s21
    %p201 = scmp.eq.s32.totalorder %s200, 0
    %s203 = sadd.s32 %s202, 1
    %s204 = scalar_select %p201, %s202, %s203
    %p207 = pneg %p201
    %p208 = scmp.eq.s32.totalorder %s14, 1
    %p209 = por %p207, %p208
    %p210 = scmp.ne.s32.totalorder %s202, %s205
    %p211 = scmp.eq.s32.totalorder %s14, 0
    %p212 = por %p210, %p211
    %p213 = scmp.ne.s32.totalorder %s202, %s205
    %p214 = scmp.eq.s32.totalorder %s19, 1
    %p215 = por %p213, %p214
    %p216 = scmp.ne.s32.totalorder %s205, %s206
    %p217 = scmp.eq.s32.totalorder %s19, 0
    %p218 = por %p216, %p217
    %p219 = scmp.ne.s32.totalorder %s205, %s206
    %p220 = scmp.eq.s32.totalorder %s20, 1
    %p221 = por %p219, %p220
    %p223 = scmp.ne.s32.totalorder %s206, %s222
    %p224 = scmp.eq.s32.totalorder %s20, 0
    %p225 = por %p223, %p224
    %p226 = scmp.le.s32.totalorder 1, %s14
    %p227 = scmp.lt.s32.totalorder %s14, 3
    %p228 = pnand %p226, %p227
    %p229 = pneg %p228
    // Predicated region
    $region9: #{nonparametric_forward.1} parent=5 // pred_check
      _
    $region10: #{nonparametric_forward.1} parent=5 // pred_check_branch
      %231 = sbr.rel (%p228) target = $region12
    $region11: #{nonparametric_forward.1} parent=5 // pred_region
      %s232 = ssub.s32 %s14, 1
      // Predicated region
      $region13: #{nonparametric_forward.1} parent=11 // pred_check
        %p233 = pneg %p87
      $region14: #{nonparametric_forward.1} parent=11 // pred_check_branch
        %235 = sbr.rel (%p233) target = $region16
      $region15: #{nonparametric_forward.1} parent=11 // pred_region
        _
      $region16: #{nonparametric_forward.1} parent=11 // pred_fallthru
        _
      // Predicated region
      $region17: #{nonparametric_forward.1} parent=11 // pred_check
        %p236 = pneg %p108
      $region18: #{nonparametric_forward.1} parent=11 // pred_check_branch
        %238 = sbr.rel (%p236) target = $region20
      $region19: #{nonparametric_forward.1} parent=11 // pred_region
        _
      $region20: #{nonparametric_forward.1} parent=11 // pred_fallthru
        _
      // Predicated region
      $region21: #{nonparametric_forward.1} parent=11 // pred_check
        %p239 = pneg %p129
      $region22: #{nonparametric_forward.1} parent=11 // pred_check_branch
        %241 = sbr.rel (%p239) target = $region24
      $region23: #{nonparametric_forward.1} parent=11 // pred_region
        _
      $region24: #{nonparametric_forward.1} parent=11 // pred_fallthru
        _
      // Predicated region
      $region25: #{nonparametric_forward.1} parent=11 // pred_check
        %p242 = pneg %p150
      $region26: #{nonparametric_forward.1} parent=11 // pred_check_branch
        %244 = sbr.rel (%p242) target = $region28
      $region27: #{nonparametric_forward.1} parent=11 // pred_region
        _
      $region28: #{nonparametric_forward.1} parent=11 // pred_fallthru
        _
      // Predicated region
      $region29: #{nonparametric_forward.1} parent=11 // pred_check
        %p245 = pneg %p171
      $region30: #{nonparametric_forward.1} parent=11 // pred_check_branch
        %247 = sbr.rel (%p245) target = $region32
      $region31: #{nonparametric_forward.1} parent=11 // pred_region
        _
      $region32: #{nonparametric_forward.1} parent=11 // pred_fallthru
        _
      // Predicated region
      $region33: #{nonparametric_forward.1} parent=11 // pred_check
        %p248 = pneg %p192
      $region34: #{nonparametric_forward.1} parent=11 // pred_check_branch
        %250 = sbr.rel (%p248) target = $region36
      $region35: #{nonparametric_forward.1} parent=11 // pred_region
        _
      $region36: #{nonparametric_forward.1} parent=11 // pred_fallthru
        _
    $region12: #{nonparametric_forward.1} parent=5 // pred_fallthru
      _
    %p251 = scmp.lt.s32.totalorder %s14, 2
    // Predicated region
    $region37: #{nonparametric_forward.1} parent=5 // pred_check
      %p252 = pneg %p251
    $region38: #{nonparametric_forward.1} parent=5 // pred_check_branch
      %254 = sbr.rel (%p252) target = $region40
    $region39: #{nonparametric_forward.1} parent=5 // pred_region
      // Predicated region
      $region41: #{nonparametric_forward.1} parent=39 // pred_check
        %p255 = pneg %p34
      $region42: #{nonparametric_forward.1} parent=39 // pred_check_branch
        %257 = sbr.rel (%p255) target = $region44
      $region43: #{nonparametric_forward.1} parent=39 // pred_region
        %p258 = scmp.lt.s32.totalorder %s14, 1
        %s259 = scalar_select %p258, %s14, 1
        %s260 = smul.addr %s259, 4
        %s261 = smul.addr %s260, 4
        %s262 = scalar_lea.vmem %s0, %s261
      $region44: #{nonparametric_forward.1} parent=39 // pred_fallthru
        _
      // Predicated region
      $region45: #{nonparametric_forward.1} parent=39 // pred_check
        %p263 = pneg %p60
      $region46: #{nonparametric_forward.1} parent=39 // pred_check_branch
        %265 = sbr.rel (%p263) target = $region48
      $region47: #{nonparametric_forward.1} parent=39 // pred_region
        %p266 = scmp.lt.s32.totalorder %s14, 1
        %s267 = scalar_select %p266, %s14, 1
        %s268 = smul.addr %s267, 3
        %s269 = smul.addr %s268, 8
        %s270 = scalar_lea.vmem %s1, %s269
      $region48: #{nonparametric_forward.1} parent=39 // pred_fallthru
        _
    $region40: #{nonparametric_forward.1} parent=5 // pred_fallthru
      _
    %p271 = scmp.le.s32.totalorder 1, %s14
    %p272 = scmp.lt.s32.totalorder %s14, 3
    %p273 = pnand %p271, %p272
    %p274 = pneg %p273
    // Predicated region
    $region49: #{nonparametric_forward.1} parent=5 // pred_check
      _
    $region50: #{nonparametric_forward.1} parent=5 // pred_check_branch
      %276 = sbr.rel (%p273) target = $region52
    $region51: #{nonparametric_forward.1} parent=5 // pred_region
      %s277 = ssub.s32 %s14, 1
      %p278 = scmp.lt.s32.totalorder %s19, 1
      %s279 = scalar_select %p278, %s19, 1
      %s280 = smul.addr %s279, 4
      %s281 = smul.addr %s280, 4
      %s282 = scalar_lea.vmem %s0, %s281
      %p283 = pneg %p40
      %p284 = pneg %p37
      %p285 = scmp.lt.s32.totalorder %s19, 1
      %s286 = scalar_select %p285, %s19, 1
      %s287 = smul.addr %s286, 3
      %s288 = smul.addr %s287, 8
      %s289 = scalar_lea.vmem %s1, %s288
      %p290 = pneg %p66
      %p291 = pneg %p63
      %p292 = pneg %p87
      %p293 = pneg %p84
      %p294 = pneg %p108
      %p295 = pneg %p105
      %p296 = pneg %p129
      %p297 = pneg %p126
      %p298 = pneg %p150
      %p299 = pneg %p147
      %p300 = pneg %p171
      %p301 = pneg %p168
      %p302 = pneg %p192
      %p303 = pneg %p189
      %p304 = pneg %p218
      %p305 = pneg %p215
      %p306 = scmp.lt.s32.totalorder %s19, 1
      %s307 = scalar_select %p306, %s19, 1
      %s308 = smul.addr %s307, 3
      %s309 = smul.addr %s308, 8
      %s310 = scalar_lea.vmem %s8, %s309
      %p311 = scmp.lt.s32.totalorder %s19, 1
      %s312 = scalar_select %p311, %s19, 1
      %s313 = smul.addr %s312, 4
      %s314 = smul.addr %s313, 4
      %s315 = scalar_lea.vmem %s0, %s314
      %p316 = scmp.lt.s32.totalorder %s19, 1
      %s317 = scalar_select %p316, %s19, 1
      %s318 = smul.addr %s317, 3
      %s319 = smul.addr %s318, 8
      %s320 = scalar_lea.vmem %s1, %s319
      %p321 = scmp.lt.s32.totalorder %s19, 1
      %s322 = scalar_select %p321, %s19, 1
      %s323 = smul.addr %s322, 3
      %s324 = smul.addr %s323, 8
      %s325 = scalar_lea.vmem %s8, %s324
      %v326 = vld [vmem:[%s315] sm:$0x77]
      %v327 = vld [vmem:[%s315 + $0x8] sm:$0x77]
      %v328 = vld [vmem:[%s5] sm:$0xff]
      %v329 = vld [vmem:[%s6] sm:$0xff]
      %v330 = vld [vmem:[%s6 + $0x8] sm:$0xff]
      %v331 = vld [vmem:[%s6 + $0x10] sm:$0xff]
      %v332 = vld [vmem:[%s6 + $0x18] sm:$0xff]
      %v333 = vld [vmem:[%s6 + $0x20] sm:$0xff]
      %v334 = vld [vmem:[%s6 + $0x28] sm:$0xff]
      %v335 = vld [vmem:[%s6 + $0x30] sm:$0xff]
      %v336 = vld [vmem:[%s6 + $0x38] sm:$0xff]
      %v337 = vld [vmem:[%s7] sm:$0xff]
      %v338 = vld [vmem:[%s7 + $0x8] sm:$0xff]
      %v339 = vld [vmem:[%s7 + $0x10] sm:$0xff]
      %v340 = vld [vmem:[%s7 + $0x18] sm:$0xff]
      %v341 = vld [vmem:[%s7 + $0x20] sm:$0xff]
      %v342 = vld [vmem:[%s7 + $0x28] sm:$0xff]
      %v343 = vld [vmem:[%s7 + $0x30] sm:$0xff]
      %v344 = vld [vmem:[%s7 + $0x38] sm:$0xff]
      %v345 = vld [vmem:[%s320] sm:$0xff]
      %s346 = scalar_lea.vmem %s320, 8
      %v347 = vld [vmem:[%s346] sm:$0xff]
      %vm348 = vcmask 523264
      %v350 = vsel %vm348, %v347, 0
      %352 = vmatprep.subr.mxu0 0.0
      %353 = vmatpush1.msra.mxu0 %v329
      %354 = vmatprep.subr.mxu0 0.0
      %355 = vmatpush1.msra.mxu0 %v330
      %356 = vmatprep.subr.mxu0 0.0
      %357 = vmatpush1.msra.mxu0 %v331
      %358 = vmatprep.subr.mxu0 0.0
      %359 = vmatpush1.msra.mxu0 %v332
      %360 = vmatprep.subr.mxu0 0.0
      %361 = vmatpush1.msra.mxu0 %v333
      %362 = vmatprep.subr.mxu0 0.0
      %363 = vmatpush1.msra.mxu0 %v334
      %364 = vmatprep.subr.mxu0 0.0
      %365 = vmatpush1.msra.mxu0 %v335
      %366 = vmatprep.subr.mxu0 0.0
      %367 = vmatpush1.msra.mxu0 %v336
      %368 = vmatprep.subr.mxu0 0.0
      %369 = vmatpush1.msra.mxu0 0.0
      %370 = vmatprep.subr.mxu0 0.0
      %371 = vmatpush1.msra.mxu0 0.0
      %372 = vmatprep.subr.mxu0 0.0
      %373 = vmatpush1.msra.mxu0 0.0
      %374 = vmatprep.subr.mxu0 0.0
      %375 = vmatpush1.msra.mxu0 0.0
      %376 = vmatprep.subr.mxu0 0.0
      %377 = vmatpush1.msra.mxu0 0.0
      %378 = vmatprep.subr.mxu0 0.0
      %379 = vmatpush1.msra.mxu0 0.0
      %380 = vmatprep.subr.mxu0 0.0
      %381 = vmatpush1.msra.mxu0 0.0
      %382 = vmatprep.subr.mxu0 0.0
      %383 = vmatpush1.msra.mxu0 0.0
      %384 = vmatprep.subr.mxu0 0.0
      %385 = vmatpush1.msra.mxu0 0.0
      %386 = vmatprep.subr.mxu0 0.0
      %387 = vmatpush1.msra.mxu0 0.0
      %388 = vmatprep.subr.mxu0 0.0
      %389 = vmatpush1.msra.mxu0 0.0
      %390 = vmatprep.subr.mxu0 0.0
      %391 = vmatpush1.msra.mxu0 0.0
      %392 = vmatprep.subr.mxu0 0.0
      %393 = vmatpush1.msra.mxu0 0.0
      %394 = vmatprep.subr.mxu0 0.0
      %395 = vmatpush1.msra.mxu0 0.0
      %396 = vmatprep.subr.mxu0 0.0
      %397 = vmatpush1.msra.mxu0 0.0
      %398 = vmatprep.subr.mxu0 0.0
      %399 = vmatpush1.msra.mxu0 0.0
      %400 = vmatprep.subr.mxu0 0.0
      %401 = vmatpush1.msra.mxu0 0.0
      %402 = vmatprep.subr.mxu0 0.0
      %403 = vmatpush1.msra.mxu0 0.0
      %404 = vmatprep.subr.mxu0 0.0
      %405 = vmatpush1.msra.mxu0 0.0
      %406 = vmatprep.subr.mxu0 0.0
      %407 = vmatpush1.msra.mxu0 0.0
      %408 = vmatprep.subr.mxu0 0.0
      %409 = vmatpush1.msra.mxu0 0.0
      %410 = vmatprep.subr.mxu0 0.0
      %411 = vmatpush1.msra.mxu0 0.0
      %412 = vmatprep.subr.mxu0 0.0
      %413 = vmatpush1.msra.mxu0 0.0
      %414 = vmatprep.subr.mxu0 0.0
      %415 = vmatpush1.msra.mxu0 0.0
      %416 = vmatprep.mubr.f32.mxu0 0.0
      %417 = vmatmul.mubr.f32.gmra.mrb[0].mxu0 %v350
      %v418 = vpop.f32.mrb[0].mxu0
      %v419 = vadd.f32 0.0, %v418
      %v420 = vpop.f32.mrb[0].mxu0
      %421 = vdwg.mxu0
      %vm422 = vcmask 64512
      %v424 = vsel %vm422, %v328, 0
      %426 = vmatprep.subr.mxu0 0.0
      %427 = vmatpush1.msra.mxu0 %v345
      %428 = vmatprep.subr.mxu0 0.0
      %429 = vmatpush1.msra.mxu0 0.0
      %430 = vmatprep.subr.mxu0 0.0
      %431 = vmatpush1.msra.mxu0 0.0
      %432 = vmatprep.subr.mxu0 0.0
      %433 = vmatpush1.msra.mxu0 0.0
      %434 = vmatprep.subr.mxu0 0.0
      %435 = vmatpush1.msra.mxu0 0.0
      %436 = vmatprep.subr.mxu0 0.0
      %437 = vmatpush1.msra.mxu0 0.0
      %438 = vmatprep.subr.mxu0 0.0
      %439 = vmatpush1.msra.mxu0 0.0
      %440 = vmatprep.subr.mxu0 0.0
      %441 = vmatpush1.msra.mxu0 0.0
      %442 = vmatprep.subr.mxu0 0.0
      %443 = vmatpush1.msra.mxu0 0.0
      %444 = vmatprep.subr.mxu0 0.0
      %445 = vmatpush1.msra.mxu0 0.0
      %446 = vmatprep.subr.mxu0 0.0
      %447 = vmatpush1.msra.mxu0 0.0
      %448 = vmatprep.subr.mxu0 0.0
      %449 = vmatpush1.msra.mxu0 0.0
      %450 = vmatprep.subr.mxu0 0.0
      %451 = vmatpush1.msra.mxu0 0.0
      %452 = vmatprep.subr.mxu0 0.0
      %453 = vmatpush1.msra.mxu0 0.0
      %454 = vmatprep.subr.mxu0 0.0
      %455 = vmatpush1.msra.mxu0 0.0
      %456 = vmatprep.subr.mxu0 0.0
      %457 = vmatpush1.msra.mxu0 0.0
      %458 = vmatprep.subr.mxu0 0.0
      %459 = vmatpush1.msra.mxu0 0.0
      %460 = vmatprep.subr.mxu0 0.0
      %461 = vmatpush1.msra.mxu0 0.0
      %462 = vmatprep.subr.mxu0 0.0
      %463 = vmatpush1.msra.mxu0 0.0
      %464 = vmatprep.subr.mxu0 0.0
      %465 = vmatpush1.msra.mxu0 0.0
      %466 = vmatprep.subr.mxu0 0.0
      %467 = vmatpush1.msra.mxu0 0.0
      %468 = vmatprep.subr.mxu0 0.0
      %469 = vmatpush1.msra.mxu0 0.0
      %470 = vmatprep.subr.mxu0 0.0
      %471 = vmatpush1.msra.mxu0 0.0
      %472 = vmatprep.subr.mxu0 0.0
      %473 = vmatpush1.msra.mxu0 0.0
      %474 = vmatprep.subr.mxu0 0.0
      %475 = vmatpush1.msra.mxu0 0.0
      %476 = vmatprep.subr.mxu0 0.0
      %477 = vmatpush1.msra.mxu0 0.0
      %478 = vmatprep.subr.mxu0 0.0
      %479 = vmatpush1.msra.mxu0 0.0
      %480 = vmatprep.subr.mxu0 0.0
      %481 = vmatpush1.msra.mxu0 0.0
      %482 = vmatprep.subr.mxu0 0.0
      %483 = vmatpush1.msra.mxu0 0.0
      %484 = vmatprep.subr.mxu0 0.0
      %485 = vmatpush1.msra.mxu0 0.0
      %486 = vmatprep.subr.mxu0 0.0
      %487 = vmatpush1.msra.mxu0 0.0
      %488 = vmatprep.subr.mxu0 0.0
      %489 = vmatpush1.msra.mxu0 0.0
      %490 = vmatprep.mubr.f32.mxu0 0.0
      %491 = vmatmul.mubr.f32.gmra.mrb[0].mxu0 %v424
      %v492 = vpop.f32.mrb[0].mxu0
      %v493 = vadd.f32 %v419, %v492
      %v494 = vpop.f32.mrb[0].mxu0
      %495 = vdwg.mxu0
      %s496 = scalar_lea.vmem %s320, 16
      %v497 = vld [vmem:[%s496] sm:$0xff]
      %v499 = vsel %vm348, %v497, 0
      %501 = vmatprep.subr.mxu0 0.0
      %502 = vmatpush1.msra.mxu0 %v337
      %503 = vmatprep.subr.mxu0 0.0
      %504 = vmatpush1.msra.mxu0 %v338
      %505 = vmatprep.subr.mxu0 0.0
      %506 = vmatpush1.msra.mxu0 %v339
      %507 = vmatprep.subr.mxu0 0.0
      %508 = vmatpush1.msra.mxu0 %v340
      %509 = vmatprep.subr.mxu0 0.0
      %510 = vmatpush1.msra.mxu0 %v341
      %511 = vmatprep.subr.mxu0 0.0
      %512 = vmatpush1.msra.mxu0 %v342
      %513 = vmatprep.subr.mxu0 0.0
      %514 = vmatpush1.msra.mxu0 %v343
      %515 = vmatprep.subr.mxu0 0.0
      %516 = vmatpush1.msra.mxu0 %v344
      %517 = vmatprep.subr.mxu0 0.0
      %518 = vmatpush1.msra.mxu0 0.0
      %519 = vmatprep.subr.mxu0 0.0
      %520 = vmatpush1.msra.mxu0 0.0
      %521 = vmatprep.subr.mxu0 0.0
      %522 = vmatpush1.msra.mxu0 0.0
      %523 = vmatprep.subr.mxu0 0.0
      %524 = vmatpush1.msra.mxu0 0.0
      %525 = vmatprep.subr.mxu0 0.0
      %526 = vmatpush1.msra.mxu0 0.0
      %527 = vmatprep.subr.mxu0 0.0
      %528 = vmatpush1.msra.mxu0 0.0
      %529 = vmatprep.subr.mxu0 0.0
      %530 = vmatpush1.msra.mxu0 0.0
      %531 = vmatprep.subr.mxu0 0.0
      %532 = vmatpush1.msra.mxu0 0.0
      %533 = vmatprep.subr.mxu0 0.0
      %534 = vmatpush1.msra.mxu0 0.0
      %535 = vmatprep.subr.mxu0 0.0
      %536 = vmatpush1.msra.mxu0 0.0
      %537 = vmatprep.subr.mxu0 0.0
      %538 = vmatpush1.msra.mxu0 0.0
      %539 = vmatprep.subr.mxu0 0.0
      %540 = vmatpush1.msra.mxu0 0.0
      %541 = vmatprep.subr.mxu0 0.0
      %542 = vmatpush1.msra.mxu0 0.0
      %543 = vmatprep.subr.mxu0 0.0
      %544 = vmatpush1.msra.mxu0 0.0
      %545 = vmatprep.subr.mxu0 0.0
      %546 = vmatpush1.msra.mxu0 0.0
      %547 = vmatprep.subr.mxu0 0.0
      %548 = vmatpush1.msra.mxu0 0.0
      %549 = vmatprep.subr.mxu0 0.0
      %550 = vmatpush1.msra.mxu0 0.0
      %551 = vmatprep.subr.mxu0 0.0
      %552 = vmatpush1.msra.mxu0 0.0
      %553 = vmatprep.subr.mxu0 0.0
      %554 = vmatpush1.msra.mxu0 0.0
      %555 = vmatprep.subr.mxu0 0.0
      %556 = vmatpush1.msra.mxu0 0.0
      %557 = vmatprep.subr.mxu0 0.0
      %558 = vmatpush1.msra.mxu0 0.0
      %559 = vmatprep.subr.mxu0 0.0
      %560 = vmatpush1.msra.mxu0 0.0
      %561 = vmatprep.subr.mxu0 0.0
      %562 = vmatpush1.msra.mxu0 0.0
      %563 = vmatprep.subr.mxu0 0.0
      %564 = vmatpush1.msra.mxu0 0.0
      %565 = vmatprep.mubr.f32.mxu0 0.0
      %566 = vmatmul.mubr.f32.gmra.mrb[0].mxu0 %v499
      %v567 = vpop.f32.mrb[0].mxu0
      %v568 = vadd.f32 0.0, %v567
      %v569 = vpop.f32.mrb[0].mxu0
      %570 = vdwg.mxu0
      %v571 = vadd.f32 %v493, %v568
      %v572 = vld [vmem:[%s2] sm:$0xff]
      %v573 = vld [vmem:[%s2 + $0x8] sm:$0xff]
      %v574 = vld [vmem:[%s2 + $0x10] sm:$0xff]
      %v575 = vld [vmem:[%s2 + $0x18] sm:$0xff]
      %v576 = vld [vmem:[%s2 + $0x20] sm:$0xff]
      %v577 = vld [vmem:[%s2 + $0x28] sm:$0xff]
      %v578 = vld [vmem:[%s2 + $0x30] sm:$0xff]
      %v579 = vld [vmem:[%s2 + $0x38] sm:$0xff]
      %v580 = vld [vmem:[%s3] sm:$0xff]
      %v581 = vld [vmem:[%s3 + $0x8] sm:$0xff]
      %v584 = vcombine.high %v326, %v326
      %v585 = vcombine.high %v327, %v327
      %vm586 = vcmask 23552
      %v588 = vsel %vm586, %v580, 0
      %v591 = vsel %vm586, %v581, 0
      %vm593 = vcmask 1042432
      %v594 = vsel %vm593, %v326, 0
      %v596 = vsel %vm593, %v584, 0
      %v598 = vsel %vm593, %v327, 0
      %v600 = vsel %vm593, %v585, 0
      %602 = vmatprep.subr.mxu0 %v596
      %603 = vmatpush1.msra.mxu0 %v594
      %604 = vmatprep.subr.mxu0 0.0
      %605 = vmatpush1.msra.mxu0 0.0
      %606 = vmatprep.subr.mxu0 0.0
      %607 = vmatpush1.msra.mxu0 0.0
      %608 = vmatprep.subr.mxu0 0.0
      %609 = vmatpush1.msra.mxu0 0.0
      %610 = vmatprep.subr.mxu0 0.0
      %611 = vmatpush1.msra.mxu0 0.0
      %612 = vmatprep.subr.mxu0 0.0
      %613 = vmatpush1.msra.mxu0 0.0
      %614 = vmatprep.subr.mxu0 0.0
      %615 = vmatpush1.msra.mxu0 0.0
      %616 = vmatprep.subr.mxu0 0.0
      %617 = vmatpush1.msra.mxu0 0.0
      %618 = vmatprep.subr.mxu0 0.0
      %619 = vmatpush1.msra.mxu0 0.0
      %620 = vmatprep.subr.mxu0 0.0
      %621 = vmatpush1.msra.mxu0 0.0
      %622 = vmatprep.subr.mxu0 0.0
      %623 = vmatpush1.msra.mxu0 0.0
      %624 = vmatprep.subr.mxu0 0.0
      %625 = vmatpush1.msra.mxu0 0.0
      %626 = vmatprep.subr.mxu0 0.0
      %627 = vmatpush1.msra.mxu0 0.0
      %628 = vmatprep.subr.mxu0 0.0
      %629 = vmatpush1.msra.mxu0 0.0
      %630 = vmatprep.subr.mxu0 0.0
      %631 = vmatpush1.msra.mxu0 0.0
      %632 = vmatprep.subr.mxu0 0.0
      %633 = vmatpush1.msra.mxu0 0.0
      %634 = vmatprep.subr.mxu0 0.0
      %635 = vmatpush1.msra.mxu0 0.0
      %636 = vmatprep.subr.mxu0 0.0
      %637 = vmatpush1.msra.mxu0 0.0
      %638 = vmatprep.subr.mxu0 0.0
      %639 = vmatpush1.msra.mxu0 0.0
      %640 = vmatprep.subr.mxu0 0.0
      %641 = vmatpush1.msra.mxu0 0.0
      %642 = vmatprep.subr.mxu0 0.0
      %643 = vmatpush1.msra.mxu0 0.0
      %644 = vmatprep.subr.mxu0 0.0
      %645 = vmatpush1.msra.mxu0 0.0
      %646 = vmatprep.subr.mxu0 0.0
      %647 = vmatpush1.msra.mxu0 0.0
      %648 = vmatprep.subr.mxu0 0.0
      %649 = vmatpush1.msra.mxu0 0.0
      %650 = vmatprep.subr.mxu0 0.0
      %651 = vmatpush1.msra.mxu0 0.0
      %652 = vmatprep.subr.mxu0 0.0
      %653 = vmatpush1.msra.mxu0 0.0
      %654 = vmatprep.subr.mxu0 0.0
      %655 = vmatpush1.msra.mxu0 0.0
      %656 = vmatprep.subr.mxu0 0.0
      %657 = vmatpush1.msra.mxu0 0.0
      %658 = vmatprep.subr.mxu0 0.0
      %659 = vmatpush1.msra.mxu0 0.0
      %660 = vmatprep.subr.mxu0 0.0
      %661 = vmatpush1.msra.mxu0 0.0
      %662 = vmatprep.subr.mxu0 0.0
      %663 = vmatpush1.msra.mxu0 0.0
      %664 = vmatprep.subr.mxu0 0.0
      %665 = vmatpush1.msra.mxu0 0.0
      %666 = vmatprep.mubr.f32.mxu0 0.0
      %667 = vmatmul.mubr.f32.gmra.mrb[0].mxu0 %v588
      %v668 = vpop.f32.mrb[0].mxu0
      %v669 = vadd.f32 0.0, %v668
      %v670 = vpop.f32.mrb[0].mxu0
      %v671 = vadd.f32 0.0, %v670
      %672 = vmatprep.mubr.f32.mxu0 0.0
      %673 = vmatmul.mubr.f32.gmra.mrb[0].mxu0 %v591
      %v674 = vpop.f32.mrb[0].mxu0
      %v675 = vadd.f32 0.0, %v674
      %v676 = vpop.f32.mrb[0].mxu0
      %v677 = vadd.f32 0.0, %v676
      %678 = vdwg.mxu0
      %679 = vmatprep.subr.mxu0 %v600
      %680 = vmatpush1.msra.mxu0 %v598
      %681 = vmatprep.subr.mxu0 0.0
      %682 = vmatpush1.msra.mxu0 0.0
      %683 = vmatprep.subr.mxu0 0.0
      %684 = vmatpush1.msra.mxu0 0.0
      %685 = vmatprep.subr.mxu0 0.0
      %686 = vmatpush1.msra.mxu0 0.0
      %687 = vmatprep.subr.mxu0 0.0
      %688 = vmatpush1.msra.mxu0 0.0
      %689 = vmatprep.subr.mxu0 0.0
      %690 = vmatpush1.msra.mxu0 0.0
      %691 = vmatprep.subr.mxu0 0.0
      %692 = vmatpush1.msra.mxu0 0.0
      %693 = vmatprep.subr.mxu0 0.0
      %694 = vmatpush1.msra.mxu0 0.0
      %695 = vmatprep.subr.mxu0 0.0
      %696 = vmatpush1.msra.mxu0 0.0
      %697 = vmatprep.subr.mxu0 0.0
      %698 = vmatpush1.msra.mxu0 0.0
      %699 = vmatprep.subr.mxu0 0.0
      %700 = vmatpush1.msra.mxu0 0.0
      %701 = vmatprep.subr.mxu0 0.0
      %702 = vmatpush1.msra.mxu0 0.0
      %703 = vmatprep.subr.mxu0 0.0
      %704 = vmatpush1.msra.mxu0 0.0
      %705 = vmatprep.subr.mxu0 0.0
      %706 = vmatpush1.msra.mxu0 0.0
      %707 = vmatprep.subr.mxu0 0.0
      %708 = vmatpush1.msra.mxu0 0.0
      %709 = vmatprep.subr.mxu0 0.0
      %710 = vmatpush1.msra.mxu0 0.0
      %711 = vmatprep.subr.mxu0 0.0
      %712 = vmatpush1.msra.mxu0 0.0
      %713 = vmatprep.subr.mxu0 0.0
      %714 = vmatpush1.msra.mxu0 0.0
      %715 = vmatprep.subr.mxu0 0.0
      %716 = vmatpush1.msra.mxu0 0.0
      %717 = vmatprep.subr.mxu0 0.0
      %718 = vmatpush1.msra.mxu0 0.0
      %719 = vmatprep.subr.mxu0 0.0
      %720 = vmatpush1.msra.mxu0 0.0
      %721 = vmatprep.subr.mxu0 0.0
      %722 = vmatpush1.msra.mxu0 0.0
      %723 = vmatprep.subr.mxu0 0.0
      %724 = vmatpush1.msra.mxu0 0.0
      %725 = vmatprep.subr.mxu0 0.0
      %726 = vmatpush1.msra.mxu0 0.0
      %727 = vmatprep.subr.mxu0 0.0
      %728 = vmatpush1.msra.mxu0 0.0
      %729 = vmatprep.subr.mxu0 0.0
      %730 = vmatpush1.msra.mxu0 0.0
      %731 = vmatprep.subr.mxu0 0.0
      %732 = vmatpush1.msra.mxu0 0.0
      %733 = vmatprep.subr.mxu0 0.0
      %734 = vmatpush1.msra.mxu0 0.0
      %735 = vmatprep.subr.mxu0 0.0
      %736 = vmatpush1.msra.mxu0 0.0
      %737 = vmatprep.subr.mxu0 0.0
      %738 = vmatpush1.msra.mxu0 0.0
      %739 = vmatprep.subr.mxu0 0.0
      %740 = vmatpush1.msra.mxu0 0.0
      %741 = vmatprep.subr.mxu0 0.0
      %742 = vmatpush1.msra.mxu0 0.0
      %743 = vmatprep.mubr.f32.mxu0 0.0
      %744 = vmatmul.mubr.f32.gmra.mrb[0].mxu0 %v588
      %v745 = vpop.f32.mrb[0].mxu0
      %v746 = vadd.f32 0.0, %v745
      %v747 = vpop.f32.mrb[0].mxu0
      %v748 = vadd.f32 0.0, %v747
      %749 = vmatprep.mubr.f32.mxu0 0.0
      %750 = vmatmul.mubr.f32.gmra.mrb[0].mxu0 %v591
      %v751 = vpop.f32.mrb[0].mxu0
      %v752 = vadd.f32 0.0, %v751
      %v753 = vpop.f32.mrb[0].mxu0
      %v754 = vadd.f32 0.0, %v753
      %755 = vdwg.mxu0
      %v756 = vadd.f32 %v572, %v669
      %v757 = vadd.f32 %v573, %v671
      %v758 = vadd.f32 %v574, %v746
      %v759 = vadd.f32 %v575, %v748
      %v760 = vadd.f32 %v576, %v675
      %v761 = vadd.f32 %v577, %v677
      %v762 = vadd.f32 %v578, %v752
      %v763 = vadd.f32 %v579, %v754
      %v764 = vmax.f32 %v756, 0.0
      %v765 = vmax.f32 %v757, 0.0
      %v766 = vmax.f32 %v758, 0.0
      %v767 = vmax.f32 %v759, 0.0
      %v768 = vmax.f32 %v760, 0.0
      %v769 = vmax.f32 %v761, 0.0
      %v770 = vmax.f32 %v762, 0.0
      %v771 = vmax.f32 %v763, 0.0
      %v772 = vld [vmem:[%s3 + $0x10] sm:$0xff]
      %v773 = vld [vmem:[%s3 + $0x18] sm:$0xff]
      %v774 = vld [vmem:[%s3 + $0x20] sm:$0xff]
      %v775 = vld [vmem:[%s3 + $0x28] sm:$0xff]
      %v776 = vld [vmem:[%s3 + $0x30] sm:$0xff]
      %v777 = vld [vmem:[%s3 + $0x38] sm:$0xff]
      %v778 = vld [vmem:[%s3 + $0x40] sm:$0xff]
      %v779 = vld [vmem:[%s3 + $0x48] sm:$0xff]
      %781 = vset.pattern.permute.xlu0 16
      %782 = vperm.xlu0 %781, %v772
      %v783 = vpop.permute.xlu0 %782
      %786 = vset.pattern.permute.xlu0 16
      %787 = vperm.xlu0 %786, %v773
      %v788 = vpop.permute.xlu0 %787
      %791 = vset.pattern.permute.xlu0 16
      %792 = vperm.xlu0 %791, %v774
      %v793 = vpop.permute.xlu0 %792
      %796 = vset.pattern.permute.xlu0 16
      %797 = vperm.xlu0 %796, %v775
      %v798 = vpop.permute.xlu0 %797
      %801 = vset.pattern.permute.xlu0 16
      %802 = vperm.xlu0 %801, %v776
      %v803 = vpop.permute.xlu0 %802
      %806 = vset.pattern.permute.xlu0 16
      %807 = vperm.xlu0 %806, %v777
      %v808 = vpop.permute.xlu0 %807
      %811 = vset.pattern.permute.xlu0 16
      %812 = vperm.xlu0 %811, %v778
      %v813 = vpop.permute.xlu0 %812
      %816 = vset.pattern.permute.xlu0 16
      %817 = vperm.xlu0 %816, %v779
      %v818 = vpop.permute.xlu0 %817
      %vm820 = vcmask 130048
      %v821 = vsel %vm820, %v772, 0
      %v823 = vsel %vm820, %v773, 0
      %v825 = vsel %vm820, %v774, 0
      %v827 = vsel %vm820, %v775, 0
      %v829 = vsel %vm820, %v776, 0
      %v831 = vsel %vm820, %v777, 0
      %v833 = vsel %vm820, %v778, 0
      %v835 = vsel %vm820, %v779, 0
      %837 = vmatprep.subr.mxu0 %v765
      %838 = vmatpush1.msra.mxu0 %v764
      %839 = vmatprep.subr.mxu0 %v769
      %840 = vmatpush1.msra.mxu0 %v768
      %841 = vmatprep.subr.mxu0 0.0
      %842 = vmatpush1.msra.mxu0 0.0
      %843 = vmatprep.subr.mxu0 0.0
      %844 = vmatpush1.msra.mxu0 0.0
      %845 = vmatprep.subr.mxu0 0.0
      %846 = vmatpush1.msra.mxu0 0.0
      %847 = vmatprep.subr.mxu0 0.0
      %848 = vmatpush1.msra.mxu0 0.0
      %849 = vmatprep.subr.mxu0 0.0
      %850 = vmatpush1.msra.mxu0 0.0
      %851 = vmatprep.subr.mxu0 0.0
      %852 = vmatpush1.msra.mxu0 0.0
      %853 = vmatprep.subr.mxu0 0.0
      %854 = vmatpush1.msra.mxu0 0.0
      %855 = vmatprep.subr.mxu0 0.0
      %856 = vmatpush1.msra.mxu0 0.0
      %857 = vmatprep.subr.mxu0 0.0
      %858 = vmatpush1.msra.mxu0 0.0
      %859 = vmatprep.subr.mxu0 0.0
      %860 = vmatpush1.msra.mxu0 0.0
      %861 = vmatprep.subr.mxu0 0.0
      %862 = vmatpush1.msra.mxu0 0.0
      %863 = vmatprep.subr.mxu0 0.0
      %864 = vmatpush1.msra.mxu0 0.0
      %865 = vmatprep.subr.mxu0 0.0
      %866 = vmatpush1.msra.mxu0 0.0
      %867 = vmatprep.subr.mxu0 0.0
      %868 = vmatpush1.msra.mxu0 0.0
      %869 = vmatprep.subr.mxu0 0.0
      %870 = vmatpush1.msra.mxu0 0.0
      %871 = vmatprep.subr.mxu0 0.0
      %872 = vmatpush1.msra.mxu0 0.0
      %873 = vmatprep.subr.mxu0 0.0
      %874 = vmatpush1.msra.mxu0 0.0
      %875 = vmatprep.subr.mxu0 0.0
      %876 = vmatpush1.msra.mxu0 0.0
      %877 = vmatprep.subr.mxu0 0.0
      %878 = vmatpush1.msra.mxu0 0.0
      %879 = vmatprep.subr.mxu0 0.0
      %880 = vmatpush1.msra.mxu0 0.0
      %881 = vmatprep.subr.mxu0 0.0
      %882 = vmatpush1.msra.mxu0 0.0
      %883 = vmatprep.subr.mxu0 0.0
      %884 = vmatpush1.msra.mxu0 0.0
      %885 = vmatprep.subr.mxu0 0.0
      %886 = vmatpush1.msra.mxu0 0.0
      %887 = vmatprep.subr.mxu0 0.0
      %888 = vmatpush1.msra.mxu0 0.0
      %889 = vmatprep.subr.mxu0 0.0
      %890 = vmatpush1.msra.mxu0 0.0
      %891 = vmatprep.subr.mxu0 0.0
      %892 = vmatpush1.msra.mxu0 0.0
      %893 = vmatprep.subr.mxu0 0.0
      %894 = vmatpush1.msra.mxu0 0.0
      %895 = vmatprep.subr.mxu0 0.0
      %896 = vmatpush1.msra.mxu0 0.0
      %897 = vmatprep.subr.mxu0 0.0
      %898 = vmatpush1.msra.mxu0 0.0
      %899 = vmatprep.subr.mxu0 0.0
      %900 = vmatpush1.msra.mxu0 0.0
      %901 = vmatprep.mubr.f32.mxu0 0.0
      %902 = vmatmul.mubr.f32.gmra.mrb[0].mxu0 %v821
      %v903 = vpop.f32.mrb[0].mxu0
      %v904 = vadd.f32 %v783, %v903
      %v905 = vpop.f32.mrb[0].mxu0
      %v906 = vadd.f32 %v783, %v905
      %907 = vmatprep.mubr.f32.mxu0 0.0
      %908 = vmatmul.mubr.f32.gmra.mrb[0].mxu0 %v823
      %v909 = vpop.f32.mrb[0].mxu0
      %v910 = vadd.f32 %v788, %v909
      %v911 = vpop.f32.mrb[0].mxu0
      %v912 = vadd.f32 %v788, %v911
      %913 = vmatprep.mubr.f32.mxu0 0.0
      %914 = vmatmul.mubr.f32.gmra.mrb[0].mxu0 %v825
      %v915 = vpop.f32.mrb[0].mxu0
      %v916 = vadd.f32 %v793, %v915
      %v917 = vpop.f32.mrb[0].mxu0
      %v918 = vadd.f32 %v793, %v917
      %919 = vmatprep.mubr.f32.mxu0 0.0
      %920 = vmatmul.mubr.f32.gmra.mrb[0].mxu0 %v827
      %v921 = vpop.f32.mrb[0].mxu0
      %v922 = vadd.f32 %v798, %v921
      %v923 = vpop.f32.mrb[0].mxu0
      %v924 = vadd.f32 %v798, %v923
      %925 = vmatprep.mubr.f32.mxu0 0.0
      %926 = vmatmul.mubr.f32.gmra.mrb[0].mxu0 %v829
      %v927 = vpop.f32.mrb[0].mxu0
      %v928 = vadd.f32 %v803, %v927
      %v929 = vpop.f32.mrb[0].mxu0
      %v930 = vadd.f32 %v803, %v929
      %931 = vmatprep.mubr.f32.mxu0 0.0
      %932 = vmatmul.mubr.f32.gmra.mrb[0].mxu0 %v831
      %v933 = vpop.f32.mrb[0].mxu0
      %v934 = vadd.f32 %v808, %v933
      %v935 = vpop.f32.mrb[0].mxu0
      %v936 = vadd.f32 %v808, %v935
      %937 = vmatprep.mubr.f32.mxu0 0.0
      %938 = vmatmul.mubr.f32.gmra.mrb[0].mxu0 %v833
      %v939 = vpop.f32.mrb[0].mxu0
      %v940 = vadd.f32 %v813, %v939
      %v941 = vpop.f32.mrb[0].mxu0
      %v942 = vadd.f32 %v813, %v941
      %943 = vmatprep.mubr.f32.mxu0 0.0
      %944 = vmatmul.mubr.f32.gmra.mrb[0].mxu0 %v835
      %v945 = vpop.f32.mrb[0].mxu0
      %v946 = vadd.f32 %v818, %v945
      %v947 = vpop.f32.mrb[0].mxu0
      %v948 = vadd.f32 %v818, %v947
      %949 = vdwg.mxu0
      %950 = vmatprep.subr.mxu0 %v767
      %951 = vmatpush1.msra.mxu0 %v766
      %952 = vmatprep.subr.mxu0 %v771
      %953 = vmatpush1.msra.mxu0 %v770
      %954 = vmatprep.subr.mxu0 0.0
      %955 = vmatpush1.msra.mxu0 0.0
      %956 = vmatprep.subr.mxu0 0.0
      %957 = vmatpush1.msra.mxu0 0.0
      %958 = vmatprep.subr.mxu0 0.0
      %959 = vmatpush1.msra.mxu0 0.0
      %960 = vmatprep.subr.mxu0 0.0
      %961 = vmatpush1.msra.mxu0 0.0
      %962 = vmatprep.subr.mxu0 0.0
      %963 = vmatpush1.msra.mxu0 0.0
      %964 = vmatprep.subr.mxu0 0.0
      %965 = vmatpush1.msra.mxu0 0.0
      %966 = vmatprep.subr.mxu0 0.0
      %967 = vmatpush1.msra.mxu0 0.0
      %968 = vmatprep.subr.mxu0 0.0
      %969 = vmatpush1.msra.mxu0 0.0
      %970 = vmatprep.subr.mxu0 0.0
      %971 = vmatpush1.msra.mxu0 0.0
      %972 = vmatprep.subr.mxu0 0.0
      %973 = vmatpush1.msra.mxu0 0.0
      %974 = vmatprep.subr.mxu0 0.0
      %975 = vmatpush1.msra.mxu0 0.0
      %976 = vmatprep.subr.mxu0 0.0
      %977 = vmatpush1.msra.mxu0 0.0
      %978 = vmatprep.subr.mxu0 0.0
      %979 = vmatpush1.msra.mxu0 0.0
      %980 = vmatprep.subr.mxu0 0.0
      %981 = vmatpush1.msra.mxu0 0.0
      %982 = vmatprep.subr.mxu0 0.0
      %983 = vmatpush1.msra.mxu0 0.0
      %984 = vmatprep.subr.mxu0 0.0
      %985 = vmatpush1.msra.mxu0 0.0
      %986 = vmatprep.subr.mxu0 0.0
      %987 = vmatpush1.msra.mxu0 0.0
      %988 = vmatprep.subr.mxu0 0.0
      %989 = vmatpush1.msra.mxu0 0.0
      %990 = vmatprep.subr.mxu0 0.0
      %991 = vmatpush1.msra.mxu0 0.0
      %992 = vmatprep.subr.mxu0 0.0
      %993 = vmatpush1.msra.mxu0 0.0
      %994 = vmatprep.subr.mxu0 0.0
      %995 = vmatpush1.msra.mxu0 0.0
      %996 = vmatprep.subr.mxu0 0.0
      %997 = vmatpush1.msra.mxu0 0.0
      %998 = vmatprep.subr.mxu0 0.0
      %999 = vmatpush1.msra.mxu0 0.0
      %1000 = vmatprep.subr.mxu0 0.0
      %1001 = vmatpush1.msra.mxu0 0.0
      %1002 = vmatprep.subr.mxu0 0.0
      %1003 = vmatpush1.msra.mxu0 0.0
      %1004 = vmatprep.subr.mxu0 0.0
      %1005 = vmatpush1.msra.mxu0 0.0
      %1006 = vmatprep.subr.mxu0 0.0
      %1007 = vmatpush1.msra.mxu0 0.0
      %1008 = vmatprep.subr.mxu0 0.0
      %1009 = vmatpush1.msra.mxu0 0.0
      %1010 = vmatprep.subr.mxu0 0.0
      %1011 = vmatpush1.msra.mxu0 0.0
      %1012 = vmatprep.subr.mxu0 0.0
      %1013 = vmatpush1.msra.mxu0 0.0
      %1014 = vmatprep.mubr.f32.mxu0 0.0
      %1015 = vmatmul.mubr.f32.gmra.mrb[0].mxu0 %v821
      %v1016 = vpop.f32.mrb[0].mxu0
      %v1017 = vadd.f32 %v783, %v1016
      %v1018 = vpop.f32.mrb[0].mxu0
      %v1019 = vadd.f32 %v783, %v1018
      %1020 = vmatprep.mubr.f32.mxu0 0.0
      %1021 = vmatmul.mubr.f32.gmra.mrb[0].mxu0 %v823
      %v1022 = vpop.f32.mrb[0].mxu0
      %v1023 = vadd.f32 %v788, %v1022
      %v1024 = vpop.f32.mrb[0].mxu0
      %v1025 = vadd.f32 %v788, %v1024
      %1026 = vmatprep.mubr.f32.mxu0 0.0
      %1027 = vmatmul.mubr.f32.gmra.mrb[0].mxu0 %v825
      %v1028 = vpop.f32.mrb[0].mxu0
      %v1029 = vadd.f32 %v793, %v1028
      %v1030 = vpop.f32.mrb[0].mxu0
      %v1031 = vadd.f32 %v793, %v1030
      %1032 = vmatprep.mubr.f32.mxu0 0.0
      %1033 = vmatmul.mubr.f32.gmra.mrb[0].mxu0 %v827
      %v1034 = vpop.f32.mrb[0].mxu0
      %v1035 = vadd.f32 %v798, %v1034
      %v1036 = vpop.f32.mrb[0].mxu0
      %v1037 = vadd.f32 %v798, %v1036
      %1038 = vmatprep.mubr.f32.mxu0 0.0
      %1039 = vmatmul.mubr.f32.gmra.mrb[0].mxu0 %v829
      %v1040 = vpop.f32.mrb[0].mxu0
      %v1041 = vadd.f32 %v803, %v1040
      %v1042 = vpop.f32.mrb[0].mxu0
      %v1043 = vadd.f32 %v803, %v1042
      %1044 = vmatprep.mubr.f32.mxu0 0.0
      %1045 = vmatmul.mubr.f32.gmra.mrb[0].mxu0 %v831
      %v1046 = vpop.f32.mrb[0].mxu0
      %v1047 = vadd.f32 %v808, %v1046
      %v1048 = vpop.f32.mrb[0].mxu0
      %v1049 = vadd.f32 %v808, %v1048
      %1050 = vmatprep.mubr.f32.mxu0 0.0
      %1051 = vmatmul.mubr.f32.gmra.mrb[0].mxu0 %v833
      %v1052 = vpop.f32.mrb[0].mxu0
      %v1053 = vadd.f32 %v813, %v1052
      %v1054 = vpop.f32.mrb[0].mxu0
      %v1055 = vadd.f32 %v813, %v1054
      %1056 = vmatprep.mubr.f32.mxu0 0.0
      %1057 = vmatmul.mubr.f32.gmra.mrb[0].mxu0 %v835
      %v1058 = vpop.f32.mrb[0].mxu0
      %v1059 = vadd.f32 %v818, %v1058
      %v1060 = vpop.f32.mrb[0].mxu0
      %v1061 = vadd.f32 %v818, %v1060
      %1062 = vdwg.mxu0
      %v1063 = vmax.f32 %v904, 0.0
      %v1064 = vmax.f32 %v906, 0.0
      %v1065 = vmax.f32 %v1017, 0.0
      %v1066 = vmax.f32 %v1019, 0.0
      %v1067 = vmax.f32 %v910, 0.0
      %v1068 = vmax.f32 %v912, 0.0
      %v1069 = vmax.f32 %v1023, 0.0
      %v1070 = vmax.f32 %v1025, 0.0
      %v1071 = vmax.f32 %v916, 0.0
      %v1072 = vmax.f32 %v918, 0.0
      %v1073 = vmax.f32 %v1029, 0.0
      %v1074 = vmax.f32 %v1031, 0.0
      %v1075 = vmax.f32 %v922, 0.0
      %v1076 = vmax.f32 %v924, 0.0
      %v1077 = vmax.f32 %v1035, 0.0
      %v1078 = vmax.f32 %v1037, 0.0
      %v1079 = vmax.f32 %v928, 0.0
      %v1080 = vmax.f32 %v930, 0.0
      %v1081 = vmax.f32 %v1041, 0.0
      %v1082 = vmax.f32 %v1043, 0.0
      %v1083 = vmax.f32 %v934, 0.0
      %v1084 = vmax.f32 %v936, 0.0
      %v1085 = vmax.f32 %v1047, 0.0
      %v1086 = vmax.f32 %v1049, 0.0
      %v1087 = vmax.f32 %v940, 0.0
      %v1088 = vmax.f32 %v942, 0.0
      %v1089 = vmax.f32 %v1053, 0.0
      %v1090 = vmax.f32 %v1055, 0.0
      %v1091 = vmax.f32 %v946, 0.0
      %v1092 = vmax.f32 %v948, 0.0
      %v1093 = vmax.f32 %v1059, 0.0
      %v1094 = vmax.f32 %v1061, 0.0
      %v1095 = vld [vmem:[%s3 + $0x50] sm:$0xff]
      %v1096 = vld [vmem:[%s3 + $0x58] sm:$0xff]
      %v1097 = vld [vmem:[%s3 + $0x60] sm:$0xff]
      %v1098 = vld [vmem:[%s3 + $0x68] sm:$0xff]
      %v1099 = vld [vmem:[%s3 + $0x70] sm:$0xff]
      %v1100 = vld [vmem:[%s3 + $0x78] sm:$0xff]
      %v1101 = vld [vmem:[%s3 + $0x80] sm:$0xff]
      %v1102 = vld [vmem:[%s3 + $0x88] sm:$0xff]
      %1104 = vset.pattern.permute.xlu0 64
      %1105 = vperm.xlu0 %1104, %v1095
      %v1106 = vpop.permute.xlu0 %1105
      %1109 = vset.pattern.permute.xlu0 64
      %1110 = vperm.xlu0 %1109, %v1096
      %v1111 = vpop.permute.xlu0 %1110
      %1114 = vset.pattern.permute.xlu0 64
      %1115 = vperm.xlu0 %1114, %v1097
      %v1116 = vpop.permute.xlu0 %1115
      %1119 = vset.pattern.permute.xlu0 64
      %1120 = vperm.xlu0 %1119, %v1098
      %v1121 = vpop.permute.xlu0 %1120
      %1124 = vset.pattern.permute.xlu0 64
      %1125 = vperm.xlu0 %1124, %v1099
      %v1126 = vpop.permute.xlu0 %1125
      %1129 = vset.pattern.permute.xlu0 64
      %1130 = vperm.xlu0 %1129, %v1100
      %v1131 = vpop.permute.xlu0 %1130
      %1134 = vset.pattern.permute.xlu0 64
      %1135 = vperm.xlu0 %1134, %v1101
      %v1136 = vpop.permute.xlu0 %1135
      %1139 = vset.pattern.permute.xlu0 64
      %1140 = vperm.xlu0 %1139, %v1102
      %v1141 = vpop.permute.xlu0 %1140
      %v1143 = vsel %vm348, %v1095, 0
      %v1145 = vsel %vm348, %v1096, 0
      %v1147 = vsel %vm348, %v1097, 0
      %v1149 = vsel %vm348, %v1098, 0
      %v1151 = vsel %vm348, %v1099, 0
      %v1153 = vsel %vm348, %v1100, 0
      %v1155 = vsel %vm348, %v1101, 0
      %v1157 = vsel %vm348, %v1102, 0
      %1159 = vmatprep.subr.mxu0 %v1064
      %1160 = vmatpush1.msra.mxu0 %v1063
      %1161 = vmatprep.subr.mxu0 %v1068
      %1162 = vmatpush1.msra.mxu0 %v1067
      %1163 = vmatprep.subr.mxu0 %v1072
      %1164 = vmatpush1.msra.mxu0 %v1071
      %1165 = vmatprep.subr.mxu0 %v1076
      %1166 = vmatpush1.msra.mxu0 %v1075
      %1167 = vmatprep.subr.mxu0 %v1080
      %1168 = vmatpush1.msra.mxu0 %v1079
      %1169 = vmatprep.subr.mxu0 %v1084
      %1170 = vmatpush1.msra.mxu0 %v1083
      %1171 = vmatprep.subr.mxu0 %v1088
      %1172 = vmatpush1.msra.mxu0 %v1087
      %1173 = vmatprep.subr.mxu0 %v1092
      %1174 = vmatpush1.msra.mxu0 %v1091
      %1175 = vmatprep.subr.mxu0 0.0
      %1176 = vmatpush1.msra.mxu0 0.0
      %1177 = vmatprep.subr.mxu0 0.0
      %1178 = vmatpush1.msra.mxu0 0.0
      %1179 = vmatprep.subr.mxu0 0.0
      %1180 = vmatpush1.msra.mxu0 0.0
      %1181 = vmatprep.subr.mxu0 0.0
      %1182 = vmatpush1.msra.mxu0 0.0
      %1183 = vmatprep.subr.mxu0 0.0
      %1184 = vmatpush1.msra.mxu0 0.0
      %1185 = vmatprep.subr.mxu0 0.0
      %1186 = vmatpush1.msra.mxu0 0.0
      %1187 = vmatprep.subr.mxu0 0.0
      %1188 = vmatpush1.msra.mxu0 0.0
      %1189 = vmatprep.subr.mxu0 0.0
      %1190 = vmatpush1.msra.mxu0 0.0
      %1191 = vmatprep.subr.mxu0 0.0
      %1192 = vmatpush1.msra.mxu0 0.0
      %1193 = vmatprep.subr.mxu0 0.0
      %1194 = vmatpush1.msra.mxu0 0.0
      %1195 = vmatprep.subr.mxu0 0.0
      %1196 = vmatpush1.msra.mxu0 0.0
      %1197 = vmatprep.subr.mxu0 0.0
      %1198 = vmatpush1.msra.mxu0 0.0
      %1199 = vmatprep.subr.mxu0 0.0
      %1200 = vmatpush1.msra.mxu0 0.0
      %1201 = vmatprep.subr.mxu0 0.0
      %1202 = vmatpush1.msra.mxu0 0.0
      %1203 = vmatprep.subr.mxu0 0.0
      %1204 = vmatpush1.msra.mxu0 0.0
      %1205 = vmatprep.subr.mxu0 0.0
      %1206 = vmatpush1.msra.mxu0 0.0
      %1207 = vmatprep.subr.mxu0 0.0
      %1208 = vmatpush1.msra.mxu0 0.0
      %1209 = vmatprep.subr.mxu0 0.0
      %1210 = vmatpush1.msra.mxu0 0.0
      %1211 = vmatprep.subr.mxu0 0.0
      %1212 = vmatpush1.msra.mxu0 0.0
      %1213 = vmatprep.subr.mxu0 0.0
      %1214 = vmatpush1.msra.mxu0 0.0
      %1215 = vmatprep.subr.mxu0 0.0
      %1216 = vmatpush1.msra.mxu0 0.0
      %1217 = vmatprep.subr.mxu0 0.0
      %1218 = vmatpush1.msra.mxu0 0.0
      %1219 = vmatprep.subr.mxu0 0.0
      %1220 = vmatpush1.msra.mxu0 0.0
      %1221 = vmatprep.subr.mxu0 0.0
      %1222 = vmatpush1.msra.mxu0 0.0
      %1223 = vmatprep.mubr.f32.mxu0 0.0
      %1224 = vmatmul.mubr.f32.gmra.mrb[0].mxu0 %v1143
      %v1225 = vpop.f32.mrb[0].mxu0
      %v1226 = vadd.f32 %v1106, %v1225
      %v1227 = vpop.f32.mrb[0].mxu0
      %v1228 = vadd.f32 %v1106, %v1227
      %1229 = vmatprep.mubr.f32.mxu0 0.0
      %1230 = vmatmul.mubr.f32.gmra.mrb[0].mxu0 %v1145
      %v1231 = vpop.f32.mrb[0].mxu0
      %v1232 = vadd.f32 %v1111, %v1231
      %v1233 = vpop.f32.mrb[0].mxu0
      %v1234 = vadd.f32 %v1111, %v1233
      %1235 = vmatprep.mubr.f32.mxu0 0.0
      %1236 = vmatmul.mubr.f32.gmra.mrb[0].mxu0 %v1147
      %v1237 = vpop.f32.mrb[0].mxu0
      %v1238 = vadd.f32 %v1116, %v1237
      %v1239 = vpop.f32.mrb[0].mxu0
      %v1240 = vadd.f32 %v1116, %v1239
      %1241 = vmatprep.mubr.f32.mxu0 0.0
      %1242 = vmatmul.mubr.f32.gmra.mrb[0].mxu0 %v1149
      %v1243 = vpop.f32.mrb[0].mxu0
      %v1244 = vadd.f32 %v1121, %v1243
      %v1245 = vpop.f32.mrb[0].mxu0
      %v1246 = vadd.f32 %v1121, %v1245
      %1247 = vmatprep.mubr.f32.mxu0 0.0
      %1248 = vmatmul.mubr.f32.gmra.mrb[0].mxu0 %v1151
      %v1249 = vpop.f32.mrb[0].mxu0
      %v1250 = vadd.f32 %v1126, %v1249
      %v1251 = vpop.f32.mrb[0].mxu0
      %v1252 = vadd.f32 %v1126, %v1251
      %1253 = vmatprep.mubr.f32.mxu0 0.0
      %1254 = vmatmul.mubr.f32.gmra.mrb[0].mxu0 %v1153
      %v1255 = vpop.f32.mrb[0].mxu0
      %v1256 = vadd.f32 %v1131, %v1255
      %v1257 = vpop.f32.mrb[0].mxu0
      %v1258 = vadd.f32 %v1131, %v1257
      %1259 = vmatprep.mubr.f32.mxu0 0.0
      %1260 = vmatmul.mubr.f32.gmra.mrb[0].mxu0 %v1155
      %v1261 = vpop.f32.mrb[0].mxu0
      %v1262 = vadd.f32 %v1136, %v1261
      %v1263 = vpop.f32.mrb[0].mxu0
      %v1264 = vadd.f32 %v1136, %v1263
      %1265 = vmatprep.mubr.f32.mxu0 0.0
      %1266 = vmatmul.mubr.f32.gmra.mrb[0].mxu0 %v1157
      %v1267 = vpop.f32.mrb[0].mxu0
      %v1268 = vadd.f32 %v1141, %v1267
      %v1269 = vpop.f32.mrb[0].mxu0
      %v1270 = vadd.f32 %v1141, %v1269
      %1271 = vdwg.mxu0
      %1272 = vmatprep.subr.mxu0 %v1066
      %1273 = vmatpush1.msra.mxu0 %v1065
      %1274 = vmatprep.subr.mxu0 %v1070
      %1275 = vmatpush1.msra.mxu0 %v1069
      %1276 = vmatprep.subr.mxu0 %v1074
      %1277 = vmatpush1.msra.mxu0 %v1073
      %1278 = vmatprep.subr.mxu0 %v1078
      %1279 = vmatpush1.msra.mxu0 %v1077
      %1280 = vmatprep.subr.mxu0 %v1082
      %1281 = vmatpush1.msra.mxu0 %v1081
      %1282 = vmatprep.subr.mxu0 %v1086
      %1283 = vmatpush1.msra.mxu0 %v1085
      %1284 = vmatprep.subr.mxu0 %v1090
      %1285 = vmatpush1.msra.mxu0 %v1089
      %1286 = vmatprep.subr.mxu0 %v1094
      %1287 = vmatpush1.msra.mxu0 %v1093
      %1288 = vmatprep.subr.mxu0 0.0
      %1289 = vmatpush1.msra.mxu0 0.0
      %1290 = vmatprep.subr.mxu0 0.0
      %1291 = vmatpush1.msra.mxu0 0.0
      %1292 = vmatprep.subr.mxu0 0.0
      %1293 = vmatpush1.msra.mxu0 0.0
      %1294 = vmatprep.subr.mxu0 0.0
      %1295 = vmatpush1.msra.mxu0 0.0
      %1296 = vmatprep.subr.mxu0 0.0
      %1297 = vmatpush1.msra.mxu0 0.0
      %1298 = vmatprep.subr.mxu0 0.0
      %1299 = vmatpush1.msra.mxu0 0.0
      %1300 = vmatprep.subr.mxu0 0.0
      %1301 = vmatpush1.msra.mxu0 0.0
      %1302 = vmatprep.subr.mxu0 0.0
      %1303 = vmatpush1.msra.mxu0 0.0
      %1304 = vmatprep.subr.mxu0 0.0
      %1305 = vmatpush1.msra.mxu0 0.0
      %1306 = vmatprep.subr.mxu0 0.0
      %1307 = vmatpush1.msra.mxu0 0.0
      %1308 = vmatprep.subr.mxu0 0.0
      %1309 = vmatpush1.msra.mxu0 0.0
      %1310 = vmatprep.subr.mxu0 0.0
      %1311 = vmatpush1.msra.mxu0 0.0
      %1312 = vmatprep.subr.mxu0 0.0
      %1313 = vmatpush1.msra.mxu0 0.0
      %1314 = vmatprep.subr.mxu0 0.0
      %1315 = vmatpush1.msra.mxu0 0.0
      %1316 = vmatprep.subr.mxu0 0.0
      %1317 = vmatpush1.msra.mxu0 0.0
      %1318 = vmatprep.subr.mxu0 0.0
      %1319 = vmatpush1.msra.mxu0 0.0
      %1320 = vmatprep.subr.mxu0 0.0
      %1321 = vmatpush1.msra.mxu0 0.0
      %1322 = vmatprep.subr.mxu0 0.0
      %1323 = vmatpush1.msra.mxu0 0.0
      %1324 = vmatprep.subr.mxu0 0.0
      %1325 = vmatpush1.msra.mxu0 0.0
      %1326 = vmatprep.subr.mxu0 0.0
      %1327 = vmatpush1.msra.mxu0 0.0
      %1328 = vmatprep.subr.mxu0 0.0
      %1329 = vmatpush1.msra.mxu0 0.0
      %1330 = vmatprep.subr.mxu0 0.0
      %1331 = vmatpush1.msra.mxu0 0.0
      %1332 = vmatprep.subr.mxu0 0.0
      %1333 = vmatpush1.msra.mxu0 0.0
      %1334 = vmatprep.subr.mxu0 0.0
      %1335 = vmatpush1.msra.mxu0 0.0
      %1336 = vmatprep.mubr.f32.mxu0 0.0
      %1337 = vmatmul.mubr.f32.gmra.mrb[0].mxu0 %v1143
      %v1338 = vpop.f32.mrb[0].mxu0
      %v1339 = vadd.f32 %v1106, %v1338
      %v1340 = vpop.f32.mrb[0].mxu0
      %v1341 = vadd.f32 %v1106, %v1340
      %1342 = vmatprep.mubr.f32.mxu0 0.0
      %1343 = vmatmul.mubr.f32.gmra.mrb[0].mxu0 %v1145
      %v1344 = vpop.f32.mrb[0].mxu0
      %v1345 = vadd.f32 %v1111, %v1344
      %v1346 = vpop.f32.mrb[0].mxu0
      %v1347 = vadd.f32 %v1111, %v1346
      %1348 = vmatprep.mubr.f32.mxu0 0.0
      %1349 = vmatmul.mubr.f32.gmra.mrb[0].mxu0 %v1147
      %v1350 = vpop.f32.mrb[0].mxu0
      %v1351 = vadd.f32 %v1116, %v1350
      %v1352 = vpop.f32.mrb[0].mxu0
      %v1353 = vadd.f32 %v1116, %v1352
      %1354 = vmatprep.mubr.f32.mxu0 0.0
      %1355 = vmatmul.mubr.f32.gmra.mrb[0].mxu0 %v1149
      %v1356 = vpop.f32.mrb[0].mxu0
      %v1357 = vadd.f32 %v1121, %v1356
      %v1358 = vpop.f32.mrb[0].mxu0
      %v1359 = vadd.f32 %v1121, %v1358
      %1360 = vmatprep.mubr.f32.mxu0 0.0
      %1361 = vmatmul.mubr.f32.gmra.mrb[0].mxu0 %v1151
      %v1362 = vpop.f32.mrb[0].mxu0
      %v1363 = vadd.f32 %v1126, %v1362
      %v1364 = vpop.f32.mrb[0].mxu0
      %v1365 = vadd.f32 %v1126, %v1364
      %1366 = vmatprep.mubr.f32.mxu0 0.0
      %1367 = vmatmul.mubr.f32.gmra.mrb[0].mxu0 %v1153
      %v1368 = vpop.f32.mrb[0].mxu0
      %v1369 = vadd.f32 %v1131, %v1368
      %v1370 = vpop.f32.mrb[0].mxu0
      %v1371 = vadd.f32 %v1131, %v1370
      %1372 = vmatprep.mubr.f32.mxu0 0.0
      %1373 = vmatmul.mubr.f32.gmra.mrb[0].mxu0 %v1155
      %v1374 = vpop.f32.mrb[0].mxu0
      %v1375 = vadd.f32 %v1136, %v1374
      %v1376 = vpop.f32.mrb[0].mxu0
      %v1377 = vadd.f32 %v1136, %v1376
      %1378 = vmatprep.mubr.f32.mxu0 0.0
      %1379 = vmatmul.mubr.f32.gmra.mrb[0].mxu0 %v1157
      %v1380 = vpop.f32.mrb[0].mxu0
      %v1381 = vadd.f32 %v1141, %v1380
      %v1382 = vpop.f32.mrb[0].mxu0
      %v1383 = vadd.f32 %v1141, %v1382
      %1384 = vdwg.mxu0
      %v1385 = vmax.f32 %v1226, 0.0
      %v1386 = vmax.f32 %v1228, 0.0
      %v1387 = vmax.f32 %v1339, 0.0
      %v1388 = vmax.f32 %v1341, 0.0
      %v1389 = vmax.f32 %v1232, 0.0
      %v1390 = vmax.f32 %v1234, 0.0
      %v1391 = vmax.f32 %v1345, 0.0
      %v1392 = vmax.f32 %v1347, 0.0
      %v1393 = vmax.f32 %v1238, 0.0
      %v1394 = vmax.f32 %v1240, 0.0
      %v1395 = vmax.f32 %v1351, 0.0
      %v1396 = vmax.f32 %v1353, 0.0
      %v1397 = vmax.f32 %v1244, 0.0
      %v1398 = vmax.f32 %v1246, 0.0
      %v1399 = vmax.f32 %v1357, 0.0
      %v1400 = vmax.f32 %v1359, 0.0
      %v1401 = vmax.f32 %v1250, 0.0
      %v1402 = vmax.f32 %v1252, 0.0
      %v1403 = vmax.f32 %v1363, 0.0
      %v1404 = vmax.f32 %v1365, 0.0
      %v1405 = vmax.f32 %v1256, 0.0
      %v1406 = vmax.f32 %v1258, 0.0
      %v1407 = vmax.f32 %v1369, 0.0
      %v1408 = vmax.f32 %v1371, 0.0
      %v1409 = vmax.f32 %v1262, 0.0
      %v1410 = vmax.f32 %v1264, 0.0
      %v1411 = vmax.f32 %v1375, 0.0
      %v1412 = vmax.f32 %v1377, 0.0
      %v1413 = vmax.f32 %v1268, 0.0
      %v1414 = vmax.f32 %v1270, 0.0
      %v1415 = vmax.f32 %v1381, 0.0
      %v1416 = vmax.f32 %v1383, 0.0
      %v1417 = vld [vmem:[%s3 + $0x90] sm:$0xff]
      %v1418 = vld [vmem:[%s3 + $0x98] sm:$0xff]
      %1420 = vset.pattern.permute.xlu0 64
      %1421 = vperm.xlu0 %1420, %v1417
      %v1422 = vpop.permute.xlu0 %1421
      %1425 = vset.pattern.permute.xlu0 64
      %1426 = vperm.xlu0 %1425, %v1418
      %v1427 = vpop.permute.xlu0 %1426
      %v1429 = vsel %vm348, %v1417, 0
      %v1431 = vsel %vm348, %v1418, 0
      %1433 = vmatprep.subr.mxu0 %v1386
      %1434 = vmatpush1.msra.mxu0 %v1385
      %1435 = vmatprep.subr.mxu0 %v1390
      %1436 = vmatpush1.msra.mxu0 %v1389
      %1437 = vmatprep.subr.mxu0 %v1394
      %1438 = vmatpush1.msra.mxu0 %v1393
      %1439 = vmatprep.subr.mxu0 %v1398
      %1440 = vmatpush1.msra.mxu0 %v1397
      %1441 = vmatprep.subr.mxu0 %v1402
      %1442 = vmatpush1.msra.mxu0 %v1401
      %1443 = vmatprep.subr.mxu0 %v1406
      %1444 = vmatpush1.msra.mxu0 %v1405
      %1445 = vmatprep.subr.mxu0 %v1410
      %1446 = vmatpush1.msra.mxu0 %v1409
      %1447 = vmatprep.subr.mxu0 %v1414
      %1448 = vmatpush1.msra.mxu0 %v1413
      %1449 = vmatprep.subr.mxu0 0.0
      %1450 = vmatpush1.msra.mxu0 0.0
      %1451 = vmatprep.subr.mxu0 0.0
      %1452 = vmatpush1.msra.mxu0 0.0
      %1453 = vmatprep.subr.mxu0 0.0
      %1454 = vmatpush1.msra.mxu0 0.0
      %1455 = vmatprep.subr.mxu0 0.0
      %1456 = vmatpush1.msra.mxu0 0.0
      %1457 = vmatprep.subr.mxu0 0.0
      %1458 = vmatpush1.msra.mxu0 0.0
      %1459 = vmatprep.subr.mxu0 0.0
      %1460 = vmatpush1.msra.mxu0 0.0
      %1461 = vmatprep.subr.mxu0 0.0
      %1462 = vmatpush1.msra.mxu0 0.0
      %1463 = vmatprep.subr.mxu0 0.0
      %1464 = vmatpush1.msra.mxu0 0.0
      %1465 = vmatprep.subr.mxu0 0.0
      %1466 = vmatpush1.msra.mxu0 0.0
      %1467 = vmatprep.subr.mxu0 0.0
      %1468 = vmatpush1.msra.mxu0 0.0
      %1469 = vmatprep.subr.mxu0 0.0
      %1470 = vmatpush1.msra.mxu0 0.0
      %1471 = vmatprep.subr.mxu0 0.0
      %1472 = vmatpush1.msra.mxu0 0.0
      %1473 = vmatprep.subr.mxu0 0.0
      %1474 = vmatpush1.msra.mxu0 0.0
      %1475 = vmatprep.subr.mxu0 0.0
      %1476 = vmatpush1.msra.mxu0 0.0
      %1477 = vmatprep.subr.mxu0 0.0
      %1478 = vmatpush1.msra.mxu0 0.0
      %1479 = vmatprep.subr.mxu0 0.0
      %1480 = vmatpush1.msra.mxu0 0.0
      %1481 = vmatprep.subr.mxu0 0.0
      %1482 = vmatpush1.msra.mxu0 0.0
      %1483 = vmatprep.subr.mxu0 0.0
      %1484 = vmatpush1.msra.mxu0 0.0
      %1485 = vmatprep.subr.mxu0 0.0
      %1486 = vmatpush1.msra.mxu0 0.0
      %1487 = vmatprep.subr.mxu0 0.0
      %1488 = vmatpush1.msra.mxu0 0.0
      %1489 = vmatprep.subr.mxu0 0.0
      %1490 = vmatpush1.msra.mxu0 0.0
      %1491 = vmatprep.subr.mxu0 0.0
      %1492 = vmatpush1.msra.mxu0 0.0
      %1493 = vmatprep.subr.mxu0 0.0
      %1494 = vmatpush1.msra.mxu0 0.0
      %1495 = vmatprep.subr.mxu0 0.0
      %1496 = vmatpush1.msra.mxu0 0.0
      %1497 = vmatprep.mubr.f32.mxu0 0.0
      %1498 = vmatmul.mubr.f32.gmra.mrb[0].mxu0 %v1429
      %v1499 = vpop.f32.mrb[0].mxu0
      %v1500 = vadd.f32 %v1422, %v1499
      %v1501 = vpop.f32.mrb[0].mxu0
      %v1502 = vadd.f32 %v1422, %v1501
      %1503 = vmatprep.mubr.f32.mxu0 0.0
      %1504 = vmatmul.mubr.f32.gmra.mrb[0].mxu0 %v1431
      %v1505 = vpop.f32.mrb[0].mxu0
      %v1506 = vadd.f32 %v1427, %v1505
      %v1507 = vpop.f32.mrb[0].mxu0
      %v1508 = vadd.f32 %v1427, %v1507
      %1509 = vdwg.mxu0
      %1510 = vmatprep.subr.mxu0 %v1388
      %1511 = vmatpush1.msra.mxu0 %v1387
      %1512 = vmatprep.subr.mxu0 %v1392
      %1513 = vmatpush1.msra.mxu0 %v1391
      %1514 = vmatprep.subr.mxu0 %v1396
      %1515 = vmatpush1.msra.mxu0 %v1395
      %1516 = vmatprep.subr.mxu0 %v1400
      %1517 = vmatpush1.msra.mxu0 %v1399
      %1518 = vmatprep.subr.mxu0 %v1404
      %1519 = vmatpush1.msra.mxu0 %v1403
      %1520 = vmatprep.subr.mxu0 %v1408
      %1521 = vmatpush1.msra.mxu0 %v1407
      %1522 = vmatprep.subr.mxu0 %v1412
      %1523 = vmatpush1.msra.mxu0 %v1411
      %1524 = vmatprep.subr.mxu0 %v1416
      %1525 = vmatpush1.msra.mxu0 %v1415
      %1526 = vmatprep.subr.mxu0 0.0
      %1527 = vmatpush1.msra.mxu0 0.0
      %1528 = vmatprep.subr.mxu0 0.0
      %1529 = vmatpush1.msra.mxu0 0.0
      %1530 = vmatprep.subr.mxu0 0.0
      %1531 = vmatpush1.msra.mxu0 0.0
      %1532 = vmatprep.subr.mxu0 0.0
      %1533 = vmatpush1.msra.mxu0 0.0
      %1534 = vmatprep.subr.mxu0 0.0
      %1535 = vmatpush1.msra.mxu0 0.0
      %1536 = vmatprep.subr.mxu0 0.0
      %1537 = vmatpush1.msra.mxu0 0.0
      %1538 = vmatprep.subr.mxu0 0.0
      %1539 = vmatpush1.msra.mxu0 0.0
      %1540 = vmatprep.subr.mxu0 0.0
      %1541 = vmatpush1.msra.mxu0 0.0
      %1542 = vmatprep.subr.mxu0 0.0
      %1543 = vmatpush1.msra.mxu0 0.0
      %1544 = vmatprep.subr.mxu0 0.0
      %1545 = vmatpush1.msra.mxu0 0.0
      %1546 = vmatprep.subr.mxu0 0.0
      %1547 = vmatpush1.msra.mxu0 0.0
      %1548 = vmatprep.subr.mxu0 0.0
      %1549 = vmatpush1.msra.mxu0 0.0
      %1550 = vmatprep.subr.mxu0 0.0
      %1551 = vmatpush1.msra.mxu0 0.0
      %1552 = vmatprep.subr.mxu0 0.0
      %1553 = vmatpush1.msra.mxu0 0.0
      %1554 = vmatprep.subr.mxu0 0.0
      %1555 = vmatpush1.msra.mxu0 0.0
      %1556 = vmatprep.subr.mxu0 0.0
      %1557 = vmatpush1.msra.mxu0 0.0
      %1558 = vmatprep.subr.mxu0 0.0
      %1559 = vmatpush1.msra.mxu0 0.0
      %1560 = vmatprep.subr.mxu0 0.0
      %1561 = vmatpush1.msra.mxu0 0.0
      %1562 = vmatprep.subr.mxu0 0.0
      %1563 = vmatpush1.msra.mxu0 0.0
      %1564 = vmatprep.subr.mxu0 0.0
      %1565 = vmatpush1.msra.mxu0 0.0
      %1566 = vmatprep.subr.mxu0 0.0
      %1567 = vmatpush1.msra.mxu0 0.0
      %1568 = vmatprep.subr.mxu0 0.0
      %1569 = vmatpush1.msra.mxu0 0.0
      %1570 = vmatprep.subr.mxu0 0.0
      %1571 = vmatpush1.msra.mxu0 0.0
      %1572 = vmatprep.subr.mxu0 0.0
      %1573 = vmatpush1.msra.mxu0 0.0
      %1574 = vmatprep.mubr.f32.mxu0 0.0
      %1575 = vmatmul.mubr.f32.gmra.mrb[0].mxu0 %v1429
      %v1576 = vpop.f32.mrb[0].mxu0
      %v1577 = vadd.f32 %v1422, %v1576
      %v1578 = vpop.f32.mrb[0].mxu0
      %v1579 = vadd.f32 %v1422, %v1578
      %1580 = vmatprep.mubr.f32.mxu0 0.0
      %1581 = vmatmul.mubr.f32.gmra.mrb[0].mxu0 %v1431
      %v1582 = vpop.f32.mrb[0].mxu0
      %v1583 = vadd.f32 %v1427, %v1582
      %v1584 = vpop.f32.mrb[0].mxu0
      %v1585 = vadd.f32 %v1427, %v1584
      %1586 = vdwg.mxu0
      %v1587 = vmax.f32 %v1500, 0.0
      %v1588 = vmax.f32 %v1502, 0.0
      %v1589 = vmax.f32 %v1577, 0.0
      %v1590 = vmax.f32 %v1579, 0.0
      %v1591 = vmax.f32 %v1506, 0.0
      %v1592 = vmax.f32 %v1508, 0.0
      %v1593 = vmax.f32 %v1583, 0.0
      %v1594 = vmax.f32 %v1585, 0.0
      %v1595 = vld [vmem:[%s3 + $0xa0] sm:$0x1]
      %1597 = vset.pattern.permute.xlu0 16
      %1598 = vperm.xlu0 %1597, %v1595
      %v1599 = vpop.permute.xlu0 %1598
      %v1601 = vsel %vm820, %v1595, 0
      %1603 = vmatprep.subr.mxu0 %v1588
      %1604 = vmatpush1.msra.mxu0 %v1587
      %1605 = vmatprep.subr.mxu0 %v1592
      %1606 = vmatpush1.msra.mxu0 %v1591
      %1607 = vmatprep.subr.mxu0 0.0
      %1608 = vmatpush1.msra.mxu0 0.0
      %1609 = vmatprep.subr.mxu0 0.0
      %1610 = vmatpush1.msra.mxu0 0.0
      %1611 = vmatprep.subr.mxu0 0.0
      %1612 = vmatpush1.msra.mxu0 0.0
      %1613 = vmatprep.subr.mxu0 0.0
      %1614 = vmatpush1.msra.mxu0 0.0
      %1615 = vmatprep.subr.mxu0 0.0
      %1616 = vmatpush1.msra.mxu0 0.0
      %1617 = vmatprep.subr.mxu0 0.0
      %1618 = vmatpush1.msra.mxu0 0.0
      %1619 = vmatprep.subr.mxu0 0.0
      %1620 = vmatpush1.msra.mxu0 0.0
      %1621 = vmatprep.subr.mxu0 0.0
      %1622 = vmatpush1.msra.mxu0 0.0
      %1623 = vmatprep.subr.mxu0 0.0
      %1624 = vmatpush1.msra.mxu0 0.0
      %1625 = vmatprep.subr.mxu0 0.0
      %1626 = vmatpush1.msra.mxu0 0.0
      %1627 = vmatprep.subr.mxu0 0.0
      %1628 = vmatpush1.msra.mxu0 0.0
      %1629 = vmatprep.subr.mxu0 0.0
      %1630 = vmatpush1.msra.mxu0 0.0
      %1631 = vmatprep.subr.mxu0 0.0
      %1632 = vmatpush1.msra.mxu0 0.0
      %1633 = vmatprep.subr.mxu0 0.0
      %1634 = vmatpush1.msra.mxu0 0.0
      %1635 = vmatprep.subr.mxu0 0.0
      %1636 = vmatpush1.msra.mxu0 0.0
      %1637 = vmatprep.subr.mxu0 0.0
      %1638 = vmatpush1.msra.mxu0 0.0
      %1639 = vmatprep.subr.mxu0 0.0
      %1640 = vmatpush1.msra.mxu0 0.0
      %1641 = vmatprep.subr.mxu0 0.0
      %1642 = vmatpush1.msra.mxu0 0.0
      %1643 = vmatprep.subr.mxu0 0.0
      %1644 = vmatpush1.msra.mxu0 0.0
      %1645 = vmatprep.subr.mxu0 0.0
      %1646 = vmatpush1.msra.mxu0 0.0
      %1647 = vmatprep.subr.mxu0 0.0
      %1648 = vmatpush1.msra.mxu0 0.0
      %1649 = vmatprep.subr.mxu0 0.0
      %1650 = vmatpush1.msra.mxu0 0.0
      %1651 = vmatprep.subr.mxu0 0.0
      %1652 = vmatpush1.msra.mxu0 0.0
      %1653 = vmatprep.subr.mxu0 0.0
      %1654 = vmatpush1.msra.mxu0 0.0
      %1655 = vmatprep.subr.mxu0 0.0
      %1656 = vmatpush1.msra.mxu0 0.0
      %1657 = vmatprep.subr.mxu0 0.0
      %1658 = vmatpush1.msra.mxu0 0.0
      %1659 = vmatprep.subr.mxu0 0.0
      %1660 = vmatpush1.msra.mxu0 0.0
      %1661 = vmatprep.subr.mxu0 0.0
      %1662 = vmatpush1.msra.mxu0 0.0
      %1663 = vmatprep.subr.mxu0 0.0
      %1664 = vmatpush1.msra.mxu0 0.0
      %1665 = vmatprep.subr.mxu0 0.0
      %1666 = vmatpush1.msra.mxu0 0.0
      %1667 = vmatprep.mubr.f32.mxu0 0.0
      %1668 = vmatmul.mubr.f32.gmra.mrb[0].mxu0 %v1601
      %v1669 = vpop.f32.mrb[0].mxu0
      %v1670 = vadd.f32 %v1599, %v1669
      %v1671 = vpop.f32.mrb[0].mxu0
      %v1672 = vadd.f32 %v1599, %v1671
      %1673 = vdwg.mxu0
      %1674 = vmatprep.subr.mxu0 %v1590
      %1675 = vmatpush1.msra.mxu0 %v1589
      %1676 = vmatprep.subr.mxu0 %v1594
      %1677 = vmatpush1.msra.mxu0 %v1593
      %1678 = vmatprep.subr.mxu0 0.0
      %1679 = vmatpush1.msra.mxu0 0.0
      %1680 = vmatprep.subr.mxu0 0.0
      %1681 = vmatpush1.msra.mxu0 0.0
      %1682 = vmatprep.subr.mxu0 0.0
      %1683 = vmatpush1.msra.mxu0 0.0
      %1684 = vmatprep.subr.mxu0 0.0
      %1685 = vmatpush1.msra.mxu0 0.0
      %1686 = vmatprep.subr.mxu0 0.0
      %1687 = vmatpush1.msra.mxu0 0.0
      %1688 = vmatprep.subr.mxu0 0.0
      %1689 = vmatpush1.msra.mxu0 0.0
      %1690 = vmatprep.subr.mxu0 0.0
      %1691 = vmatpush1.msra.mxu0 0.0
      %1692 = vmatprep.subr.mxu0 0.0
      %1693 = vmatpush1.msra.mxu0 0.0
      %1694 = vmatprep.subr.mxu0 0.0
      %1695 = vmatpush1.msra.mxu0 0.0
      %1696 = vmatprep.subr.mxu0 0.0
      %1697 = vmatpush1.msra.mxu0 0.0
      %1698 = vmatprep.subr.mxu0 0.0
      %1699 = vmatpush1.msra.mxu0 0.0
      %1700 = vmatprep.subr.mxu0 0.0
      %1701 = vmatpush1.msra.mxu0 0.0
      %1702 = vmatprep.subr.mxu0 0.0
      %1703 = vmatpush1.msra.mxu0 0.0
      %1704 = vmatprep.subr.mxu0 0.0
      %1705 = vmatpush1.msra.mxu0 0.0
      %1706 = vmatprep.subr.mxu0 0.0
      %1707 = vmatpush1.msra.mxu0 0.0
      %1708 = vmatprep.subr.mxu0 0.0
      %1709 = vmatpush1.msra.mxu0 0.0
      %1710 = vmatprep.subr.mxu0 0.0
      %1711 = vmatpush1.msra.mxu0 0.0
      %1712 = vmatprep.subr.mxu0 0.0
      %1713 = vmatpush1.msra.mxu0 0.0
      %1714 = vmatprep.subr.mxu0 0.0
      %1715 = vmatpush1.msra.mxu0 0.0
      %1716 = vmatprep.subr.mxu0 0.0
      %1717 = vmatpush1.msra.mxu0 0.0
      %1718 = vmatprep.subr.mxu0 0.0
      %1719 = vmatpush1.msra.mxu0 0.0
      %1720 = vmatprep.subr.mxu0 0.0
      %1721 = vmatpush1.msra.mxu0 0.0
      %1722 = vmatprep.subr.mxu0 0.0
      %1723 = vmatpush1.msra.mxu0 0.0
      %1724 = vmatprep.subr.mxu0 0.0
      %1725 = vmatpush1.msra.mxu0 0.0
      %1726 = vmatprep.subr.mxu0 0.0
      %1727 = vmatpush1.msra.mxu0 0.0
      %1728 = vmatprep.subr.mxu0 0.0
      %1729 = vmatpush1.msra.mxu0 0.0
      %1730 = vmatprep.subr.mxu0 0.0
      %1731 = vmatpush1.msra.mxu0 0.0
      %1732 = vmatprep.subr.mxu0 0.0
      %1733 = vmatpush1.msra.mxu0 0.0
      %1734 = vmatprep.subr.mxu0 0.0
      %1735 = vmatpush1.msra.mxu0 0.0
      %1736 = vmatprep.subr.mxu0 0.0
      %1737 = vmatpush1.msra.mxu0 0.0
      %1738 = vmatprep.mubr.f32.mxu0 0.0
      %1739 = vmatmul.mubr.f32.gmra.mrb[0].mxu0 %v1601
      %v1740 = vpop.f32.mrb[0].mxu0
      %v1741 = vadd.f32 %v1599, %v1740
      %v1742 = vpop.f32.mrb[0].mxu0
      %v1743 = vadd.f32 %v1599, %v1742
      %1744 = vdwg.mxu0
      %vm1745 = vcmask 516096
      %1746 = vst.msk [vmem:[#allocation2] sm:$0x1] %vm1745, %v1670
      %1748 = vrot.lane.b32.xlu0 %v1670, 64
      %v1749 = vpop.permute.xlu0 %1748
      %1751 = vst.msk [vmem:[#allocation2 + $0x1] sm:$0x1] %vm1745, %v1749
      %1752 = vst.msk [vmem:[#allocation2 + $0x2] sm:$0x1] %vm1745, %v1672
      %1754 = vrot.lane.b32.xlu0 %v1672, 64
      %v1755 = vpop.permute.xlu0 %1754
      %1757 = vst.msk [vmem:[#allocation2 + $0x3] sm:$0x1] %vm1745, %v1755
      %1758 = vst.msk [vmem:[#allocation2 + $0x4] sm:$0x1] %vm1745, %v1741
      %1760 = vrot.lane.b32.xlu0 %v1741, 64
      %v1761 = vpop.permute.xlu0 %1760
      %1763 = vst.msk [vmem:[#allocation2 + $0x5] sm:$0x1] %vm1745, %v1761
      %1764 = vst.msk [vmem:[#allocation2 + $0x6] sm:$0x1] %vm1745, %v1743
      %1766 = vrot.lane.b32.xlu0 %v1743, 64
      %v1767 = vpop.permute.xlu0 %1766
      %1769 = vst.msk [vmem:[#allocation2 + $0x7] sm:$0x1] %vm1745, %v1767
      %v1770 = vld [vmem:[#allocation2] sm:$0xff]
      %v1771 = vmul.f32 %v1770, %v571
      %1772 = vmatprep.subr.mxu0 0.0
      %1773 = vmatpush1.msra.mxu0 %v1771
      %1774 = vmatprep.subr.mxu0 0.0
      %1775 = vmatpush1.msra.mxu0 0.0
      %1776 = vmatprep.subr.mxu0 0.0
      %1777 = vmatpush1.msra.mxu0 0.0
      %1778 = vmatprep.subr.mxu0 0.0
      %1779 = vmatpush1.msra.mxu0 0.0
      %1780 = vmatprep.subr.mxu0 0.0
      %1781 = vmatpush1.msra.mxu0 0.0
      %1782 = vmatprep.subr.mxu0 0.0
      %1783 = vmatpush1.msra.mxu0 0.0
      %1784 = vmatprep.subr.mxu0 0.0
      %1785 = vmatpush1.msra.mxu0 0.0
      %1786 = vmatprep.subr.mxu0 0.0
      %1787 = vmatpush1.msra.mxu0 0.0
      %1788 = vmatprep.subr.mxu0 0.0
      %1789 = vmatpush1.msra.mxu0 0.0
      %1790 = vmatprep.subr.mxu0 0.0
      %1791 = vmatpush1.msra.mxu0 0.0
      %1792 = vmatprep.subr.mxu0 0.0
      %1793 = vmatpush1.msra.mxu0 0.0
      %1794 = vmatprep.subr.mxu0 0.0
      %1795 = vmatpush1.msra.mxu0 0.0
      %1796 = vmatprep.subr.mxu0 0.0
      %1797 = vmatpush1.msra.mxu0 0.0
      %1798 = vmatprep.subr.mxu0 0.0
      %1799 = vmatpush1.msra.mxu0 0.0
      %1800 = vmatprep.subr.mxu0 0.0
      %1801 = vmatpush1.msra.mxu0 0.0
      %1802 = vmatprep.subr.mxu0 0.0
      %1803 = vmatpush1.msra.mxu0 0.0
      %1804 = vmatprep.subr.mxu0 0.0
      %1805 = vmatpush1.msra.mxu0 0.0
      %1806 = vmatprep.subr.mxu0 0.0
      %1807 = vmatpush1.msra.mxu0 0.0
      %1808 = vmatprep.subr.mxu0 0.0
      %1809 = vmatpush1.msra.mxu0 0.0
      %1810 = vmatprep.subr.mxu0 0.0
      %1811 = vmatpush1.msra.mxu0 0.0
      %1812 = vmatprep.subr.mxu0 0.0
      %1813 = vmatpush1.msra.mxu0 0.0
      %1814 = vmatprep.subr.mxu0 0.0
      %1815 = vmatpush1.msra.mxu0 0.0
      %1816 = vmatprep.subr.mxu0 0.0
      %1817 = vmatpush1.msra.mxu0 0.0
      %1818 = vmatprep.subr.mxu0 0.0
      %1819 = vmatpush1.msra.mxu0 0.0
      %1820 = vmatprep.subr.mxu0 0.0
      %1821 = vmatpush1.msra.mxu0 0.0
      %1822 = vmatprep.subr.mxu0 0.0
      %1823 = vmatpush1.msra.mxu0 0.0
      %1824 = vmatprep.subr.mxu0 0.0
      %1825 = vmatpush1.msra.mxu0 0.0
      %1826 = vmatprep.subr.mxu0 0.0
      %1827 = vmatpush1.msra.mxu0 0.0
      %1828 = vmatprep.subr.mxu0 0.0
      %1829 = vmatpush1.msra.mxu0 0.0
      %1830 = vmatprep.subr.mxu0 0.0
      %1831 = vmatpush1.msra.mxu0 0.0
      %1832 = vmatprep.subr.mxu0 0.0
      %1833 = vmatpush1.msra.mxu0 0.0
      %1834 = vmatprep.subr.mxu0 0.0
      %1835 = vmatpush1.msra.mxu0 0.0
      %1836 = vmatprep.mubr.f32.mxu0 0.0
      %1837 = vmatmul.mubr.f32.gmra.mrb[0].mxu0 %v424
      %v1838 = vpop.f32.mrb[0].mxu0
      %v1839 = vadd.f32 0.0, %v1838
      %v1840 = vpop.f32.mrb[0].mxu0
      %1841 = vdwg.mxu0
      %v1843 = vsel %vm348, %v1771, 0
      %1845 = vmatprep.subr.mxu0 0.0
      %1846 = vmatpush1.msra.mxu0 %v329
      %1847 = vmatprep.subr.mxu0 0.0
      %1848 = vmatpush1.msra.mxu0 %v330
      %1849 = vmatprep.subr.mxu0 0.0
      %1850 = vmatpush1.msra.mxu0 %v331
      %1851 = vmatprep.subr.mxu0 0.0
      %1852 = vmatpush1.msra.mxu0 %v332
      %1853 = vmatprep.subr.mxu0 0.0
      %1854 = vmatpush1.msra.mxu0 %v333
      %1855 = vmatprep.subr.mxu0 0.0
      %1856 = vmatpush1.msra.mxu0 %v334
      %1857 = vmatprep.subr.mxu0 0.0
      %1858 = vmatpush1.msra.mxu0 %v335
      %1859 = vmatprep.subr.mxu0 0.0
      %1860 = vmatpush1.msra.mxu0 %v336
      %1861 = vmatprep.subr.mxu0 0.0
      %1862 = vmatpush1.msra.mxu0 0.0
      %1863 = vmatprep.subr.mxu0 0.0
      %1864 = vmatpush1.msra.mxu0 0.0
      %1865 = vmatprep.subr.mxu0 0.0
      %1866 = vmatpush1.msra.mxu0 0.0
      %1867 = vmatprep.subr.mxu0 0.0
      %1868 = vmatpush1.msra.mxu0 0.0
      %1869 = vmatprep.subr.mxu0 0.0
      %1870 = vmatpush1.msra.mxu0 0.0
      %1871 = vmatprep.subr.mxu0 0.0
      %1872 = vmatpush1.msra.mxu0 0.0
      %1873 = vmatprep.subr.mxu0 0.0
      %1874 = vmatpush1.msra.mxu0 0.0
      %1875 = vmatprep.subr.mxu0 0.0
      %1876 = vmatpush1.msra.mxu0 0.0
      %1877 = vmatprep.subr.mxu0 0.0
      %1878 = vmatpush1.msra.mxu0 0.0
      %1879 = vmatprep.subr.mxu0 0.0
      %1880 = vmatpush1.msra.mxu0 0.0
      %1881 = vmatprep.subr.mxu0 0.0
      %1882 = vmatpush1.msra.mxu0 0.0
      %1883 = vmatprep.subr.mxu0 0.0
      %1884 = vmatpush1.msra.mxu0 0.0
      %1885 = vmatprep.subr.mxu0 0.0
      %1886 = vmatpush1.msra.mxu0 0.0
      %1887 = vmatprep.subr.mxu0 0.0
      %1888 = vmatpush1.msra.mxu0 0.0
      %1889 = vmatprep.subr.mxu0 0.0
      %1890 = vmatpush1.msra.mxu0 0.0
      %1891 = vmatprep.subr.mxu0 0.0
      %1892 = vmatpush1.msra.mxu0 0.0
      %1893 = vmatprep.subr.mxu0 0.0
      %1894 = vmatpush1.msra.mxu0 0.0
      %1895 = vmatprep.subr.mxu0 0.0
      %1896 = vmatpush1.msra.mxu0 0.0
      %1897 = vmatprep.subr.mxu0 0.0
      %1898 = vmatpush1.msra.mxu0 0.0
      %1899 = vmatprep.subr.mxu0 0.0
      %1900 = vmatpush1.msra.mxu0 0.0
      %1901 = vmatprep.subr.mxu0 0.0
      %1902 = vmatpush1.msra.mxu0 0.0
      %1903 = vmatprep.subr.mxu0 0.0
      %1904 = vmatpush1.msra.mxu0 0.0
      %1905 = vmatprep.subr.mxu0 0.0
      %1906 = vmatpush1.msra.mxu0 0.0
      %1907 = vmatprep.subr.mxu0 0.0
      %1908 = vmatpush1.msra.mxu0 0.0
      %1909 = vmatprep.mubr.f32.mxu0 0.0
      %1910 = vmatmul.mubr.f32.gmra.mrb[0].mxu0 %v1843
      %v1911 = vpop.f32.mrb[0].mxu0
      %v1912 = vadd.f32 0.0, %v1911
      %v1913 = vpop.f32.mrb[0].mxu0
      %1914 = vdwg.mxu0
      %1915 = vmatprep.subr.mxu0 0.0
      %1916 = vmatpush1.msra.mxu0 %v337
      %1917 = vmatprep.subr.mxu0 0.0
      %1918 = vmatpush1.msra.mxu0 %v338
      %1919 = vmatprep.subr.mxu0 0.0
      %1920 = vmatpush1.msra.mxu0 %v339
      %1921 = vmatprep.subr.mxu0 0.0
      %1922 = vmatpush1.msra.mxu0 %v340
      %1923 = vmatprep.subr.mxu0 0.0
      %1924 = vmatpush1.msra.mxu0 %v341
      %1925 = vmatprep.subr.mxu0 0.0
      %1926 = vmatpush1.msra.mxu0 %v342
      %1927 = vmatprep.subr.mxu0 0.0
      %1928 = vmatpush1.msra.mxu0 %v343
      %1929 = vmatprep.subr.mxu0 0.0
      %1930 = vmatpush1.msra.mxu0 %v344
      %1931 = vmatprep.subr.mxu0 0.0
      %1932 = vmatpush1.msra.mxu0 0.0
      %1933 = vmatprep.subr.mxu0 0.0
      %1934 = vmatpush1.msra.mxu0 0.0
      %1935 = vmatprep.subr.mxu0 0.0
      %1936 = vmatpush1.msra.mxu0 0.0
      %1937 = vmatprep.subr.mxu0 0.0
      %1938 = vmatpush1.msra.mxu0 0.0
      %1939 = vmatprep.subr.mxu0 0.0
      %1940 = vmatpush1.msra.mxu0 0.0
      %1941 = vmatprep.subr.mxu0 0.0
      %1942 = vmatpush1.msra.mxu0 0.0
      %1943 = vmatprep.subr.mxu0 0.0
      %1944 = vmatpush1.msra.mxu0 0.0
      %1945 = vmatprep.subr.mxu0 0.0
      %1946 = vmatpush1.msra.mxu0 0.0
      %1947 = vmatprep.subr.mxu0 0.0
      %1948 = vmatpush1.msra.mxu0 0.0
      %1949 = vmatprep.subr.mxu0 0.0
      %1950 = vmatpush1.msra.mxu0 0.0
      %1951 = vmatprep.subr.mxu0 0.0
      %1952 = vmatpush1.msra.mxu0 0.0
      %1953 = vmatprep.subr.mxu0 0.0
      %1954 = vmatpush1.msra.mxu0 0.0
      %1955 = vmatprep.subr.mxu0 0.0
      %1956 = vmatpush1.msra.mxu0 0.0
      %1957 = vmatprep.subr.mxu0 0.0
      %1958 = vmatpush1.msra.mxu0 0.0
      %1959 = vmatprep.subr.mxu0 0.0
      %1960 = vmatpush1.msra.mxu0 0.0
      %1961 = vmatprep.subr.mxu0 0.0
      %1962 = vmatpush1.msra.mxu0 0.0
      %1963 = vmatprep.subr.mxu0 0.0
      %1964 = vmatpush1.msra.mxu0 0.0
      %1965 = vmatprep.subr.mxu0 0.0
      %1966 = vmatpush1.msra.mxu0 0.0
      %1967 = vmatprep.subr.mxu0 0.0
      %1968 = vmatpush1.msra.mxu0 0.0
      %1969 = vmatprep.subr.mxu0 0.0
      %1970 = vmatpush1.msra.mxu0 0.0
      %1971 = vmatprep.subr.mxu0 0.0
      %1972 = vmatpush1.msra.mxu0 0.0
      %1973 = vmatprep.subr.mxu0 0.0
      %1974 = vmatpush1.msra.mxu0 0.0
      %1975 = vmatprep.subr.mxu0 0.0
      %1976 = vmatpush1.msra.mxu0 0.0
      %1977 = vmatprep.subr.mxu0 0.0
      %1978 = vmatpush1.msra.mxu0 0.0
      %1979 = vmatprep.mubr.f32.mxu0 0.0
      %1980 = vmatmul.mubr.f32.gmra.mrb[0].mxu0 %v1843
      %v1981 = vpop.f32.mrb[0].mxu0
      %v1982 = vadd.f32 0.0, %v1981
      %v1983 = vpop.f32.mrb[0].mxu0
      %1984 = vdwg.mxu0
      %v1985 = vld [vmem:[%s4] sm:$0xff]
      %v1986 = vld [vmem:[%s4 + $0x8] sm:$0xff]
      %v1987 = vld [vmem:[%s4 + $0x10] sm:$0xff]
      %v1988 = vadd.f32 %v1985, %v1839
      %v1989 = vadd.f32 %v1986, %v1912
      %v1990 = vadd.f32 %v1987, %v1982
      %1991 = vst.msk [vmem:[%s325] sm:$0xff] %vm348, %v1988
      %1992 = vst.msk [vmem:[%s325 + $0x8] sm:$0xff] %vm348, %v1989
      %1993 = vst.msk [vmem:[%s325 + $0x10] sm:$0xff] %vm348, %v1990
      %p1994 = scmp.lt.s32.totalorder %s19, 1
      %s1995 = scalar_select %p1994, %s19, 1
      %s1996 = smul.addr %s1995, 3
      %s1997 = smul.addr %s1996, 8
      %s1998 = scalar_lea.vmem %s8, %s1997
      // Predicated region
      $region53: #{nonparametric_forward.1} parent=51 // pred_check
        %p1999 = pneg %p215
      $region54: #{nonparametric_forward.1} parent=51 // pred_check_branch
        %2001 = sbr.rel (%p1999) target = $region56
      $region55: #{nonparametric_forward.1} parent=51 // pred_region
        _
      $region56: #{nonparametric_forward.1} parent=51 // pred_fallthru
        _
    $region52: #{nonparametric_forward.1} parent=5 // pred_fallthru
      _
    %p2002 = scmp.le.s32.totalorder 2, %s14
    // Predicated region
    $region57: #{nonparametric_forward.1} parent=5 // pred_check
      %p2003 = pneg %p2002
    $region58: #{nonparametric_forward.1} parent=5 // pred_check_branch
      %2005 = sbr.rel (%p2003) target = $region60
    $region59: #{nonparametric_forward.1} parent=5 // pred_region
      %s2006 = ssub.s32 %s14, 2
      // Predicated region
      $region61: #{nonparametric_forward.1} parent=59 // pred_check
        %p2007 = pneg %p221
      $region62: #{nonparametric_forward.1} parent=59 // pred_check_branch
        %2009 = sbr.rel (%p2007) target = $region64
      $region63: #{nonparametric_forward.1} parent=59 // pred_region
        %p2010 = scmp.lt.s32.totalorder %s20, 1
        %s2011 = scalar_select %p2010, %s20, 1
        %s2012 = smul.addr %s2011, 3
        %s2013 = smul.addr %s2012, 8
        %s2014 = scalar_lea.vmem %s8, %s2013
      $region64: #{nonparametric_forward.1} parent=59 // pred_fallthru
        _
    $region60: #{nonparametric_forward.1} parent=5 // pred_fallthru
      _
  $region6: #{nonparametric_forward.1} parent=0 // loop_footer
    %s18 = sadd.s32 1, %s14
  $region7: #{nonparametric_forward.1} parent=0 // loop_footer_branch
    %13 = sbr.rel target = $region3
  $region8: #{nonparametric_forward.1} parent=0 // loop_exit
    _

</llo_original>
